<compile_context>
chip_gen: v6e
topology: v6e:2x2x1
jax: 0.10.0
libtpu: 0.0.40
codegen_flags: <defaults>
</compile_context>

<pallas_src>
import functools
import jax
import jax.numpy as jnp
from jax.experimental import pallas as pl
from jax.experimental.pallas import tpu as pltpu


def _layernorm(v, g, b, eps=1e-5):
    mu = jnp.mean(v, axis=-1, keepdims=True)
    var = jnp.mean((v - mu) ** 2, axis=-1, keepdims=True)
    return (v - mu) * jax.lax.rsqrt(var + eps) * g + b


def _gelu_exact(x):
    # PyTorch nn.GELU default = exact erf-based GELU
    return 0.5 * x * (1.0 + jax.lax.erf(x / jnp.sqrt(jnp.float32(2.0))))


def block_kernel(x_ref, ln1_g_ref, ln1_b_ref, wq_ref, wk_ref, wv_ref,
                 wproj_ref, bproj_ref, ln2_g_ref, ln2_b_ref,
                 w1_ref, b1_ref, w2_ref, b2_ref, out_ref,
                 *, num_heads, n_true):
    x = x_ref[0]                                   # (Np, D) f32
    Np, D = x.shape
    Dh = D // num_heads

    # ---- Attention branch (1/sqrt(Dh) pre-folded into Wq) ----
    xn = _layernorm(x, ln1_g_ref[0], ln1_b_ref[0]).astype(jnp.bfloat16)
    q = jnp.dot(xn, wq_ref[...], preferred_element_type=jnp.float32)   # (Np, D) f32
    k = jnp.dot(xn, wk_ref[...], preferred_element_type=jnp.float32)
    v = jnp.dot(xn, wv_ref[...], preferred_element_type=jnp.float32)

    # (Np, D) -> (H, Np, Dh), bf16 MXU operands, head dim batched (no per-head loop/concat)
    q = jnp.transpose(q.astype(jnp.bfloat16).reshape(Np, num_heads, Dh), (1, 0, 2))
    k = jnp.transpose(k.astype(jnp.bfloat16).reshape(Np, num_heads, Dh), (1, 0, 2))
    v = jnp.transpose(v.astype(jnp.bfloat16).reshape(Np, num_heads, Dh), (1, 0, 2))

    s = jnp.einsum("hqd,hkd->hqk", q, k,
                   preferred_element_type=jnp.float32)                 # (H, Np, Np) f32
    if n_true < Np:  # static: mask padded key positions
        kmask = jax.lax.broadcasted_iota(jnp.int32, (1, 1, Np), 2) < n_true
        s = jnp.where(kmask, s, jnp.float32(-1e30))

    s = s - jnp.max(s, axis=-1, keepdims=True)
    p = jnp.exp(s)
    p = p * pl.reciprocal(jnp.sum(p, axis=-1, keepdims=True), approx=True)

    o = jnp.einsum("hqk,hkd->hqd", p.astype(jnp.bfloat16), v,
                   preferred_element_type=jnp.float32)                 # (H, Np, Dh) f32
    o = jnp.transpose(o, (1, 0, 2)).reshape(Np, D)                     # head-major concat layout

    attn = jnp.dot(o.astype(jnp.bfloat16), wproj_ref[...],
                   preferred_element_type=jnp.float32) + bproj_ref[0]
    x = x + attn

    # ---- MLP branch ----
    xn2 = _layernorm(x, ln2_g_ref[0], ln2_b_ref[0])
    h1 = jnp.dot(xn2.astype(jnp.bfloat16), w1_ref[...],
                 preferred_element_type=jnp.float32) + b1_ref[0]
    h1 = _gelu_exact(h1)
    h2 = jnp.dot(h1.astype(jnp.bfloat16), w2_ref[...],
                 preferred_element_type=jnp.float32) + b2_ref[0]

    out_ref[0] = (x + h2).astype(out_ref.dtype)


def prepare_block_params(params, num_heads):
    """One-time parameter transform: split QKV, fold attention scale into Wq, cast to bf16."""
    D = params["wproj"].shape[0]
    Dh = D // num_heads
    scale = Dh ** -0.5
    prep = {k: v for k, v in params.items() if k != "wqkv"}
    prep["wq"] = (params["wqkv"][:, :D] * scale).astype(jnp.bfloat16)
    prep["wk"] = params["wqkv"][:, D:2 * D].astype(jnp.bfloat16)
    prep["wv"] = params["wqkv"][:, 2 * D:].astype(jnp.bfloat16)
    prep["wproj"] = params["wproj"].astype(jnp.bfloat16)
    prep["w1"] = params["w1"].astype(jnp.bfloat16)
    prep["w2"] = params["w2"].astype(jnp.bfloat16)
    return prep


def vit_block(x, prep, num_heads):
    B, N, D = x.shape
    Hm = prep["w1"].shape[1]

    # Pad token count to a sublane multiple; padded keys are masked inside the kernel.
    Np = ((N + 7) // 8) * 8
    x_p = jnp.pad(x, ((0, 0), (0, Np - N), (0, 0))) if Np != N else x

    # Explicit VMEM budget (bytes): weights + double-buffered io tiles + activation estimate.
    f32, bf16 = 4, 2
    weight_bytes = (3 * D * D + D * D + D * Hm + Hm * D) * bf16 + (6 * D + Hm) * f32
    io_bytes = 2 * (Np * D * f32)                                   # x tile + out tile
    act_bytes = (3 * Np * D * (f32 + bf16)
                 + num_heads * Np * Np * (f32 + bf16)
                 + Np * Hm * (f32 + bf16) + 6 * Np * D * f32)
    vmem_limit = int(min(64 * 2 ** 20,
                         max(16 * 2 ** 20, 2 * (weight_bytes + io_bytes + act_bytes))))

    def full(shape):
        return pl.BlockSpec(shape, lambda b: (0,) * len(shape))

    kernel = functools.partial(block_kernel, num_heads=num_heads, n_true=N)
    out = pl.pallas_call(
        kernel,
        out_shape=jax.ShapeDtypeStruct((B, Np, D), x.dtype),
        grid=(B,),
        in_specs=[
            pl.BlockSpec((1, Np, D), lambda b: (b, 0, 0)),   # x (per-batch tile)
            full((1, D)), full((1, D)),                      # ln1 gamma/beta (f32)
            full((D, D)), full((D, D)), full((D, D)),        # Wq (scaled), Wk, Wv (bf16)
            full((D, D)), full((1, D)),                      # Wproj (bf16), bproj (f32)
            full((1, D)), full((1, D)),                      # ln2 gamma/beta (f32)
            full((D, Hm)), full((1, Hm)),                    # fc1 (bf16 / f32)
            full((Hm, D)), full((1, D)),                     # fc2 (bf16 / f32)
        ],
        out_specs=pl.BlockSpec((1, Np, D), lambda b: (b, 0, 0)),
        compiler_params=pltpu.CompilerParams(
            dimension_semantics=("parallel",),
            vmem_limit_bytes=vmem_limit),
    )(x_p, prep["ln1_g"], prep["ln1_b"], prep["wq"], prep["wk"], prep["wv"],
      prep["wproj"], prep["bproj"], prep["ln2_g"], prep["ln2_b"],
      prep["w1"], prep["b1"], prep["w2"], prep["b2"])

    return out[:, :N, :] if Np != N else out


def reference(x, params, num_heads):
    """Pure-JAX f32 reference with identical math for validation."""
    B, N, D = x.shape
    Dh = D // num_heads
    scale = Dh ** -0.5
    xn = _layernorm(x, params["ln1_g"][0], params["ln1_b"][0])
    qkv = xn @ params["wqkv"]
    q, k, v = jnp.split(qkv, 3, axis=-1)
    q = q.reshape(B, N, num_heads, Dh).transpose(0, 2, 1, 3) * scale
    k = k.reshape(B, N, num_heads, Dh).transpose(0, 2, 1, 3)
    v = v.reshape(B, N, num_heads, Dh).transpose(0, 2, 1, 3)
    a = jax.nn.softmax(jnp.einsum("bhqd,bhkd->bhqk", q, k), axis=-1)
    o = jnp.einsum("bhqk,bhkd->bhqd", a, v).transpose(0, 2, 1, 3).reshape(B, N, D)
    o = o @ params["wproj"] + params["bproj"][0]
    x = x + o
    xn2 = _layernorm(x, params["ln2_g"][0], params["ln2_b"][0])
    h1 = _gelu_exact(xn2 @ params["w1"] + params["b1"][0])
    h2 = h1 @ params["w2"] + params["b2"][0]
    return x + h2


if __name__ == "__main__":
    B, N, D, H = 2, 8, 32, 4
    Hm = int(D * 4.0)  # mlp_ratio=4.0

    key = jax.random.PRNGKey(0)
    ks = jax.random.split(key, 5)
    params = {
        "ln1_g": jnp.ones((1, D), jnp.float32),
        "ln1_b": jnp.zeros((1, D), jnp.float32),
        "wqkv": 0.02 * jax.random.normal(ks[0], (D, 3 * D), jnp.float32),
        "wproj": 0.02 * jax.random.normal(ks[1], (D, D), jnp.float32),
        "bproj": jnp.zeros((1, D), jnp.float32),
        "ln2_g": jnp.ones((1, D), jnp.float32),
        "ln2_b": jnp.zeros((1, D), jnp.float32),
        "w1": 0.02 * jax.random.normal(ks[2], (D, Hm), jnp.float32),
        "b1": jnp.zeros((1, Hm), jnp.float32),
        "w2": 0.02 * jax.random.normal(ks[3], (Hm, D), jnp.float32),
        "b2": jnp.zeros((1, D), jnp.float32),
    }
    x = jax.random.normal(ks[4], (B, N, D), jnp.float32)

    prep = prepare_block_params(params, H)   # one-time weight transform (split + bf16 + scale fold)
    out = jax.block_until_ready(vit_block(x, prep, num_heads=H))
    ref = reference(x, params, H)
    assert out.shape == (B, N, D)
    # bf16 MXU operands + approx reciprocal -> slightly looser tolerance than pure-f32
    assert jnp.allclose(out, ref, atol=2e-2, rtol=2e-2), "mismatch vs reference"
    print("KERNEL_OK")
</pallas_src>

<mosaic_0001>
module attributes {stable_mosaic.version = 11 : i64} {
  func.func @block_kernel(%arg0: i32, %arg1: memref<1x8x32xf32, #tpu.memory_space<vmem>>, %arg2: memref<1x32xf32, #tpu.memory_space<vmem>>, %arg3: memref<1x32xf32, #tpu.memory_space<vmem>>, %arg4: memref<32x32xbf16, #tpu.memory_space<vmem>>, %arg5: memref<32x32xbf16, #tpu.memory_space<vmem>>, %arg6: memref<32x32xbf16, #tpu.memory_space<vmem>>, %arg7: memref<32x32xbf16, #tpu.memory_space<vmem>>, %arg8: memref<1x32xf32, #tpu.memory_space<vmem>>, %arg9: memref<1x32xf32, #tpu.memory_space<vmem>>, %arg10: memref<1x32xf32, #tpu.memory_space<vmem>>, %arg11: memref<32x128xbf16, #tpu.memory_space<vmem>>, %arg12: memref<1x128xf32, #tpu.memory_space<vmem>>, %arg13: memref<128x32xbf16, #tpu.memory_space<vmem>>, %arg14: memref<1x32xf32, #tpu.memory_space<vmem>>, %arg15: memref<1x8x32xf32, #tpu.memory_space<vmem>>) attributes {dimension_semantics = [#tpu.dimension_semantics<parallel>], iteration_bounds = array<i64: 2>, scalar_prefetch = 0 : i64, scratch_operands = 0 : i64, tpu.core_type = #tpu.core_type<tc>, window_params = [{transform_indices = @transform_0, window_bounds = array<i64: 1, 8, 32>}, {pipeline_mode = #tpu.pipeline_mode<synchronous>, transform_indices = @transform_1, window_bounds = array<i64: 1, 32>}, {pipeline_mode = #tpu.pipeline_mode<synchronous>, transform_indices = @transform_2, window_bounds = array<i64: 1, 32>}, {pipeline_mode = #tpu.pipeline_mode<synchronous>, transform_indices = @transform_3, window_bounds = array<i64: 32, 32>}, {pipeline_mode = #tpu.pipeline_mode<synchronous>, transform_indices = @transform_4, window_bounds = array<i64: 32, 32>}, {pipeline_mode = #tpu.pipeline_mode<synchronous>, transform_indices = @transform_5, window_bounds = array<i64: 32, 32>}, {pipeline_mode = #tpu.pipeline_mode<synchronous>, transform_indices = @transform_6, window_bounds = array<i64: 32, 32>}, {pipeline_mode = #tpu.pipeline_mode<synchronous>, transform_indices = @transform_7, window_bounds = array<i64: 1, 32>}, {pipeline_mode = #tpu.pipeline_mode<synchronous>, transform_indices = @transform_8, window_bounds = array<i64: 1, 32>}, {pipeline_mode = #tpu.pipeline_mode<synchronous>, transform_indices = @transform_9, window_bounds = array<i64: 1, 32>}, {pipeline_mode = #tpu.pipeline_mode<synchronous>, transform_indices = @transform_10, window_bounds = array<i64: 32, 128>}, {pipeline_mode = #tpu.pipeline_mode<synchronous>, transform_indices = @transform_11, window_bounds = array<i64: 1, 128>}, {pipeline_mode = #tpu.pipeline_mode<synchronous>, transform_indices = @transform_12, window_bounds = array<i64: 128, 32>}, {pipeline_mode = #tpu.pipeline_mode<synchronous>, transform_indices = @transform_13, window_bounds = array<i64: 1, 32>}, {transform_indices = @transform_14, window_bounds = array<i64: 1, 8, 32>}]} {
    %c0 = arith.constant 0 : index
    %c0_0 = arith.constant 0 : index
    %c0_1 = arith.constant 0 : index
    %0 = vector.load %arg1[%c0, %c0_0, %c0_1] : memref<1x8x32xf32, #tpu.memory_space<vmem>>, vector<1x8x32xf32>
    %1 = vector.shape_cast %0 : vector<1x8x32xf32> to vector<8x32xf32>
    %c0_2 = arith.constant 0 : index
    %c0_3 = arith.constant 0 : index
    %2 = vector.load %arg2[%c0_2, %c0_3] : memref<1x32xf32, #tpu.memory_space<vmem>>, vector<1x32xf32>
    %3 = vector.shape_cast %2 : vector<1x32xf32> to vector<32xf32>
    %c0_4 = arith.constant 0 : index
    %c0_5 = arith.constant 0 : index
    %4 = vector.load %arg3[%c0_4, %c0_5] : memref<1x32xf32, #tpu.memory_space<vmem>>, vector<1x32xf32>
    %5 = vector.shape_cast %4 : vector<1x32xf32> to vector<32xf32>
    %cst = arith.constant dense<0.000000e+00> : vector<8xf32>
    %6 = vector.multi_reduction <add>, %1, %cst [1] : vector<8x32xf32> to vector<8xf32>
    %7 = vector.shape_cast %6 : vector<8xf32> to vector<8x1xf32>
    %cst_6 = arith.constant 3.200000e+01 : f32
    %8 = vector.broadcast %cst_6 : f32 to vector<8x1xf32>
    %9 = arith.divf %7, %8 : vector<8x1xf32>
    %10 = vector.broadcast %9 : vector<8x1xf32> to vector<8x32xf32>
    %11 = arith.subf %1, %10 : vector<8x32xf32>
    %12 = arith.mulf %11, %11 : vector<8x32xf32>
    %cst_7 = arith.constant dense<0.000000e+00> : vector<8xf32>
    %13 = vector.multi_reduction <add>, %12, %cst_7 [1] : vector<8x32xf32> to vector<8xf32>
    %14 = vector.shape_cast %13 : vector<8xf32> to vector<8x1xf32>
    %cst_8 = arith.constant 3.200000e+01 : f32
    %15 = vector.broadcast %cst_8 : f32 to vector<8x1xf32>
    %16 = arith.divf %14, %15 : vector<8x1xf32>
    %17 = vector.broadcast %9 : vector<8x1xf32> to vector<8x32xf32>
    %18 = arith.subf %1, %17 : vector<8x32xf32>
    %cst_9 = arith.constant 9.99999974E-6 : f32
    %19 = vector.broadcast %cst_9 : f32 to vector<8x1xf32>
    %20 = arith.addf %16, %19 : vector<8x1xf32>
    %21 = math.rsqrt %20 : vector<8x1xf32>
    %22 = vector.broadcast %21 : vector<8x1xf32> to vector<8x32xf32>
    %23 = arith.mulf %18, %22 : vector<8x32xf32>
    %24 = vector.shape_cast %3 : vector<32xf32> to vector<1x32xf32>
    %25 = vector.broadcast %24 : vector<1x32xf32> to vector<8x32xf32>
    %26 = arith.mulf %23, %25 : vector<8x32xf32>
    %27 = vector.shape_cast %5 : vector<32xf32> to vector<1x32xf32>
    %28 = vector.broadcast %27 : vector<1x32xf32> to vector<8x32xf32>
    %29 = arith.addf %26, %28 : vector<8x32xf32>
    %30 = arith.truncf %29 : vector<8x32xf32> to vector<8x32xbf16>
    %c0_10 = arith.constant 0 : index
    %c0_11 = arith.constant 0 : index
    %31 = vector.load %arg4[%c0_10, %c0_11] : memref<32x32xbf16, #tpu.memory_space<vmem>>, vector<32x32xbf16>
    %cst_12 = arith.constant dense<0.000000e+00> : vector<8x32xf32>
    %32 = tpu.matmul %30, %31, %cst_12 {dimension_numbers = #tpu.dot_dimension_numbers<[1], [0], [0], [1], [0, 0, 1, 1], [], []>} : vector<8x32xbf16>, vector<32x32xbf16>, vector<8x32xf32> -> vector<8x32xf32>
    %c0_13 = arith.constant 0 : index
    %c0_14 = arith.constant 0 : index
    %33 = vector.load %arg5[%c0_13, %c0_14] : memref<32x32xbf16, #tpu.memory_space<vmem>>, vector<32x32xbf16>
    %cst_15 = arith.constant dense<0.000000e+00> : vector<8x32xf32>
    %34 = tpu.matmul %30, %33, %cst_15 {dimension_numbers = #tpu.dot_dimension_numbers<[1], [0], [0], [1], [0, 0, 1, 1], [], []>} : vector<8x32xbf16>, vector<32x32xbf16>, vector<8x32xf32> -> vector<8x32xf32>
    %c0_16 = arith.constant 0 : index
    %c0_17 = arith.constant 0 : index
    %35 = vector.load %arg6[%c0_16, %c0_17] : memref<32x32xbf16, #tpu.memory_space<vmem>>, vector<32x32xbf16>
    %cst_18 = arith.constant dense<0.000000e+00> : vector<8x32xf32>
    %36 = tpu.matmul %30, %35, %cst_18 {dimension_numbers = #tpu.dot_dimension_numbers<[1], [0], [0], [1], [0, 0, 1, 1], [], []>} : vector<8x32xbf16>, vector<32x32xbf16>, vector<8x32xf32> -> vector<8x32xf32>
    %37 = arith.truncf %32 : vector<8x32xf32> to vector<8x32xbf16>
    %38 = vector.shape_cast %37 : vector<8x32xbf16> to vector<8x4x8xbf16>
    %39 = tpu.transpose %38, [1, 0, 2] : vector<8x4x8xbf16> -> vector<4x8x8xbf16>
    %40 = arith.truncf %34 : vector<8x32xf32> to vector<8x32xbf16>
    %41 = vector.shape_cast %40 : vector<8x32xbf16> to vector<8x4x8xbf16>
    %42 = tpu.transpose %41, [1, 0, 2] : vector<8x4x8xbf16> -> vector<4x8x8xbf16>
    %43 = arith.truncf %36 : vector<8x32xf32> to vector<8x32xbf16>
    %44 = vector.shape_cast %43 : vector<8x32xbf16> to vector<8x4x8xbf16>
    %45 = tpu.transpose %44, [1, 0, 2] : vector<8x4x8xbf16> -> vector<4x8x8xbf16>
    "tpu.trace_start"() <{level = 10 : i32, message = "hqd,hkd->hqk"}> : () -> ()
    %cst_19 = arith.constant dense<0.000000e+00> : vector<4x8x8xf32>
    %46 = tpu.matmul %39, %42, %cst_19 {dimension_numbers = #tpu.dot_dimension_numbers<[2], [2], [1], [1], [0, 0, 0, 1, 1, 1], [0], [0]>} : vector<4x8x8xbf16>, vector<4x8x8xbf16>, vector<4x8x8xf32> -> vector<4x8x8xf32>
    "tpu.trace_stop"() : () -> ()
    %cst_20 = arith.constant dense<0xFF800000> : vector<4x8xf32>
    %47 = vector.multi_reduction <maximumf>, %46, %cst_20 [2] : vector<4x8x8xf32> to vector<4x8xf32>
    %48 = vector.shape_cast %47 : vector<4x8xf32> to vector<4x8x1xf32>
    %49 = vector.broadcast %48 : vector<4x8x1xf32> to vector<4x8x8xf32>
    %50 = arith.subf %46, %49 : vector<4x8x8xf32>
    %51 = math.exp %50 : vector<4x8x8xf32>
    %cst_21 = arith.constant dense<0.000000e+00> : vector<4x8xf32>
    %52 = vector.multi_reduction <add>, %51, %cst_21 [2] : vector<4x8x8xf32> to vector<4x8xf32>
    %53 = vector.shape_cast %52 : vector<4x8xf32> to vector<4x8x1xf32>
    %54 = tpu.reciprocal %53 {approx = true} : vector<4x8x1xf32> -> vector<4x8x1xf32>
    %55 = vector.broadcast %54 : vector<4x8x1xf32> to vector<4x8x8xf32>
    %56 = arith.mulf %51, %55 : vector<4x8x8xf32>
    %57 = arith.truncf %56 : vector<4x8x8xf32> to vector<4x8x8xbf16>
    "tpu.trace_start"() <{level = 10 : i32, message = "hqk,hkd->hqd"}> : () -> ()
    %cst_22 = arith.constant dense<0.000000e+00> : vector<4x8x8xf32>
    %58 = tpu.matmul %57, %45, %cst_22 {dimension_numbers = #tpu.dot_dimension_numbers<[2], [1], [1], [2], [0, 0, 0, 1, 1, 2], [0], [0]>} : vector<4x8x8xbf16>, vector<4x8x8xbf16>, vector<4x8x8xf32> -> vector<4x8x8xf32>
    "tpu.trace_stop"() : () -> ()
    %59 = tpu.transpose %58, [1, 0, 2] : vector<4x8x8xf32> -> vector<8x4x8xf32>
    %60 = vector.shape_cast %59 : vector<8x4x8xf32> to vector<8x32xf32>
    %61 = arith.truncf %60 : vector<8x32xf32> to vector<8x32xbf16>
    %c0_23 = arith.constant 0 : index
    %c0_24 = arith.constant 0 : index
    %62 = vector.load %arg7[%c0_23, %c0_24] : memref<32x32xbf16, #tpu.memory_space<vmem>>, vector<32x32xbf16>
    %cst_25 = arith.constant dense<0.000000e+00> : vector<8x32xf32>
    %63 = tpu.matmul %61, %62, %cst_25 {dimension_numbers = #tpu.dot_dimension_numbers<[1], [0], [0], [1], [0, 0, 1, 1], [], []>} : vector<8x32xbf16>, vector<32x32xbf16>, vector<8x32xf32> -> vector<8x32xf32>
    %c0_26 = arith.constant 0 : index
    %c0_27 = arith.constant 0 : index
    %64 = vector.load %arg8[%c0_26, %c0_27] : memref<1x32xf32, #tpu.memory_space<vmem>>, vector<1x32xf32>
    %65 = vector.shape_cast %64 : vector<1x32xf32> to vector<32xf32>
    %66 = vector.shape_cast %65 : vector<32xf32> to vector<1x32xf32>
    %67 = vector.broadcast %66 : vector<1x32xf32> to vector<8x32xf32>
    %68 = arith.addf %63, %67 : vector<8x32xf32>
    %69 = arith.addf %1, %68 : vector<8x32xf32>
    %c0_28 = arith.constant 0 : index
    %c0_29 = arith.constant 0 : index
    %70 = vector.load %arg9[%c0_28, %c0_29] : memref<1x32xf32, #tpu.memory_space<vmem>>, vector<1x32xf32>
    %71 = vector.shape_cast %70 : vector<1x32xf32> to vector<32xf32>
    %c0_30 = arith.constant 0 : index
    %c0_31 = arith.constant 0 : index
    %72 = vector.load %arg10[%c0_30, %c0_31] : memref<1x32xf32, #tpu.memory_space<vmem>>, vector<1x32xf32>
    %73 = vector.shape_cast %72 : vector<1x32xf32> to vector<32xf32>
    %cst_32 = arith.constant dense<0.000000e+00> : vector<8xf32>
    %74 = vector.multi_reduction <add>, %69, %cst_32 [1] : vector<8x32xf32> to vector<8xf32>
    %75 = vector.shape_cast %74 : vector<8xf32> to vector<8x1xf32>
    %cst_33 = arith.constant 3.200000e+01 : f32
    %76 = vector.broadcast %cst_33 : f32 to vector<8x1xf32>
    %77 = arith.divf %75, %76 : vector<8x1xf32>
    %78 = vector.broadcast %77 : vector<8x1xf32> to vector<8x32xf32>
    %79 = arith.subf %69, %78 : vector<8x32xf32>
    %80 = arith.mulf %79, %79 : vector<8x32xf32>
    %cst_34 = arith.constant dense<0.000000e+00> : vector<8xf32>
    %81 = vector.multi_reduction <add>, %80, %cst_34 [1] : vector<8x32xf32> to vector<8xf32>
    %82 = vector.shape_cast %81 : vector<8xf32> to vector<8x1xf32>
    %cst_35 = arith.constant 3.200000e+01 : f32
    %83 = vector.broadcast %cst_35 : f32 to vector<8x1xf32>
    %84 = arith.divf %82, %83 : vector<8x1xf32>
    %85 = vector.broadcast %77 : vector<8x1xf32> to vector<8x32xf32>
    %86 = arith.subf %69, %85 : vector<8x32xf32>
    %cst_36 = arith.constant 9.99999974E-6 : f32
    %87 = vector.broadcast %cst_36 : f32 to vector<8x1xf32>
    %88 = arith.addf %84, %87 : vector<8x1xf32>
    %89 = math.rsqrt %88 : vector<8x1xf32>
    %90 = vector.broadcast %89 : vector<8x1xf32> to vector<8x32xf32>
    %91 = arith.mulf %86, %90 : vector<8x32xf32>
    %92 = vector.shape_cast %71 : vector<32xf32> to vector<1x32xf32>
    %93 = vector.broadcast %92 : vector<1x32xf32> to vector<8x32xf32>
    %94 = arith.mulf %91, %93 : vector<8x32xf32>
    %95 = vector.shape_cast %73 : vector<32xf32> to vector<1x32xf32>
    %96 = vector.broadcast %95 : vector<1x32xf32> to vector<8x32xf32>
    %97 = arith.addf %94, %96 : vector<8x32xf32>
    %98 = arith.truncf %97 : vector<8x32xf32> to vector<8x32xbf16>
    %c0_37 = arith.constant 0 : index
    %c0_38 = arith.constant 0 : index
    %99 = vector.load %arg11[%c0_37, %c0_38] : memref<32x128xbf16, #tpu.memory_space<vmem>>, vector<32x128xbf16>
    %cst_39 = arith.constant dense<0.000000e+00> : vector<8x128xf32>
    %100 = tpu.matmul %98, %99, %cst_39 {dimension_numbers = #tpu.dot_dimension_numbers<[1], [0], [0], [1], [0, 0, 1, 1], [], []>} : vector<8x32xbf16>, vector<32x128xbf16>, vector<8x128xf32> -> vector<8x128xf32>
    %c0_40 = arith.constant 0 : index
    %c0_41 = arith.constant 0 : index
    %101 = vector.load %arg12[%c0_40, %c0_41] : memref<1x128xf32, #tpu.memory_space<vmem>>, vector<1x128xf32>
    %102 = vector.shape_cast %101 : vector<1x128xf32> to vector<128xf32>
    %103 = vector.shape_cast %102 : vector<128xf32> to vector<1x128xf32>
    %104 = vector.broadcast %103 : vector<1x128xf32> to vector<8x128xf32>
    %105 = arith.addf %100, %104 : vector<8x128xf32>
    %cst_42 = arith.constant 5.000000e-01 : f32
    %106 = vector.broadcast %cst_42 : f32 to vector<8x128xf32>
    %107 = arith.mulf %106, %105 : vector<8x128xf32>
    %cst_43 = arith.constant 2.000000e+00 : f32
    %108 = math.sqrt %cst_43 : f32
    %109 = vector.broadcast %108 : f32 to vector<8x128xf32>
    %110 = arith.divf %105, %109 : vector<8x128xf32>
    %111 = math.erf %110 : vector<8x128xf32>
    %cst_44 = arith.constant 1.000000e+00 : f32
    %112 = vector.broadcast %cst_44 : f32 to vector<8x128xf32>
    %113 = arith.addf %112, %111 : vector<8x128xf32>
    %114 = arith.mulf %107, %113 : vector<8x128xf32>
    %115 = arith.truncf %114 : vector<8x128xf32> to vector<8x128xbf16>
    %c0_45 = arith.constant 0 : index
    %c0_46 = arith.constant 0 : index
    %116 = vector.load %arg13[%c0_45, %c0_46] : memref<128x32xbf16, #tpu.memory_space<vmem>>, vector<128x32xbf16>
    %cst_47 = arith.constant dense<0.000000e+00> : vector<8x32xf32>
    %117 = tpu.matmul %115, %116, %cst_47 {dimension_numbers = #tpu.dot_dimension_numbers<[1], [0], [0], [1], [0, 0, 1, 1], [], []>} : vector<8x128xbf16>, vector<128x32xbf16>, vector<8x32xf32> -> vector<8x32xf32>
    %c0_48 = arith.constant 0 : index
    %c0_49 = arith.constant 0 : index
    %118 = vector.load %arg14[%c0_48, %c0_49] : memref<1x32xf32, #tpu.memory_space<vmem>>, vector<1x32xf32>
    %119 = vector.shape_cast %118 : vector<1x32xf32> to vector<32xf32>
    %120 = vector.shape_cast %119 : vector<32xf32> to vector<1x32xf32>
    %121 = vector.broadcast %120 : vector<1x32xf32> to vector<8x32xf32>
    %122 = arith.addf %117, %121 : vector<8x32xf32>
    %123 = arith.addf %69, %122 : vector<8x32xf32>
    %c0_50 = arith.constant 0 : index
    %c0_51 = arith.constant 0 : index
    %c0_52 = arith.constant 0 : index
    %124 = vector.load %arg15[%c0_50, %c0_51, %c0_52] : memref<1x8x32xf32, #tpu.memory_space<vmem>>, vector<1x8x32xf32>
    %125 = vector.shape_cast %124 : vector<1x8x32xf32> to vector<8x32xf32>
    %126 = vector.shape_cast %123 : vector<8x32xf32> to vector<1x8x32xf32>
    tpu.vector_store %arg15[%c0_50, %c0_51, %c0_52], %126 {strides = array<i32>} : memref<1x8x32xf32, #tpu.memory_space<vmem>>, vector<1x8x32xf32>,
    return
  }
  func.func @transform_0(%arg0: i32) -> (i32, i32, i32) {
    %c0_i32 = arith.constant 0 : i32
    %c0_i32_0 = arith.constant 0 : i32
    %c0_i32_1 = arith.constant 0 : i32
    return %arg0, %c0_i32, %c0_i32_0 : i32, i32, i32
  }
  func.func @transform_1(%arg0: i32) -> (i32, i32) {
    %c0_i32 = arith.constant 0 : i32
    %c0_i32_0 = arith.constant 0 : i32
    %c0_i32_1 = arith.constant 0 : i32
    return %c0_i32, %c0_i32_0 : i32, i32
  }
  func.func @transform_2(%arg0: i32) -> (i32, i32) {
    %c0_i32 = arith.constant 0 : i32
    %c0_i32_0 = arith.constant 0 : i32
    %c0_i32_1 = arith.constant 0 : i32
    return %c0_i32, %c0_i32_0 : i32, i32
  }
  func.func @transform_3(%arg0: i32) -> (i32, i32) {
    %c0_i32 = arith.constant 0 : i32
    %c0_i32_0 = arith.constant 0 : i32
    %c0_i32_1 = arith.constant 0 : i32
    return %c0_i32, %c0_i32_0 : i32, i32
  }
  func.func @transform_4(%arg0: i32) -> (i32, i32) {
    %c0_i32 = arith.constant 0 : i32
    %c0_i32_0 = arith.constant 0 : i32
    %c0_i32_1 = arith.constant 0 : i32
    return %c0_i32, %c0_i32_0 : i32, i32
  }
  func.func @transform_5(%arg0: i32) -> (i32, i32) {
    %c0_i32 = arith.constant 0 : i32
    %c0_i32_0 = arith.constant 0 : i32
    %c0_i32_1 = arith.constant 0 : i32
    return %c0_i32, %c0_i32_0 : i32, i32
  }
  func.func @transform_6(%arg0: i32) -> (i32, i32) {
    %c0_i32 = arith.constant 0 : i32
    %c0_i32_0 = arith.constant 0 : i32
    %c0_i32_1 = arith.constant 0 : i32
    return %c0_i32, %c0_i32_0 : i32, i32
  }
  func.func @transform_7(%arg0: i32) -> (i32, i32) {
    %c0_i32 = arith.constant 0 : i32
    %c0_i32_0 = arith.constant 0 : i32
    %c0_i32_1 = arith.constant 0 : i32
    return %c0_i32, %c0_i32_0 : i32, i32
  }
  func.func @transform_8(%arg0: i32) -> (i32, i32) {
    %c0_i32 = arith.constant 0 : i32
    %c0_i32_0 = arith.constant 0 : i32
    %c0_i32_1 = arith.constant 0 : i32
    return %c0_i32, %c0_i32_0 : i32, i32
  }
  func.func @transform_9(%arg0: i32) -> (i32, i32) {
    %c0_i32 = arith.constant 0 : i32
    %c0_i32_0 = arith.constant 0 : i32
    %c0_i32_1 = arith.constant 0 : i32
    return %c0_i32, %c0_i32_0 : i32, i32
  }
  func.func @transform_10(%arg0: i32) -> (i32, i32) {
    %c0_i32 = arith.constant 0 : i32
    %c0_i32_0 = arith.constant 0 : i32
    %c0_i32_1 = arith.constant 0 : i32
    return %c0_i32, %c0_i32_0 : i32, i32
  }
  func.func @transform_11(%arg0: i32) -> (i32, i32) {
    %c0_i32 = arith.constant 0 : i32
    %c0_i32_0 = arith.constant 0 : i32
    %c0_i32_1 = arith.constant 0 : i32
    return %c0_i32, %c0_i32_0 : i32, i32
  }
  func.func @transform_12(%arg0: i32) -> (i32, i32) {
    %c0_i32 = arith.constant 0 : i32
    %c0_i32_0 = arith.constant 0 : i32
    %c0_i32_1 = arith.constant 0 : i32
    return %c0_i32, %c0_i32_0 : i32, i32
  }
  func.func @transform_13(%arg0: i32) -> (i32, i32) {
    %c0_i32 = arith.constant 0 : i32
    %c0_i32_0 = arith.constant 0 : i32
    %c0_i32_1 = arith.constant 0 : i32
    return %c0_i32, %c0_i32_0 : i32, i32
  }
  func.func @transform_14(%arg0: i32) -> (i32, i32, i32) {
    %c0_i32 = arith.constant 0 : i32
    %c0_i32_0 = arith.constant 0 : i32
    %c0_i32_1 = arith.constant 0 : i32
    return %arg0, %c0_i32, %c0_i32_0 : i32, i32, i32
  }
}

</mosaic_0001>

<llo_original>
// kernel: tpu_custom_call.1
$region0: #{tpu_custom_call.1}
  #allocation0 [shape = 'u32[]', space=smem, size = 0x4, offset = 0x4, fixed_abs, tag = 'smem constant byte address 0x4 - core index']
  #allocation1 [shape = 'u32[144,128]{1,0:T(1,128)}', space=vmem, size = 0x12000, scoped, tag = 'internal scratch']
  %s0 = inlined_call_operand.vmem [shape: f32[2,8,32], index: 0, kind: input, shape index: {}]
  %s1 = inlined_call_operand.vmem [shape: f32[1,32], index: 1, kind: input, shape index: {}]
  %s2 = inlined_call_operand.vmem [shape: f32[1,32], index: 2, kind: input, shape index: {}]
  %s3 = inlined_call_operand.vmem [shape: bf16[32,32], index: 3, kind: input, shape index: {}]
  %s4 = inlined_call_operand.vmem [shape: bf16[32,32], index: 4, kind: input, shape index: {}]
  %s5 = inlined_call_operand.vmem [shape: bf16[32,32], index: 5, kind: input, shape index: {}]
  %s6 = inlined_call_operand.vmem [shape: bf16[32,32], index: 6, kind: input, shape index: {}]
  %s7 = inlined_call_operand.vmem [shape: f32[1,32], index: 7, kind: input, shape index: {}]
  %s8 = inlined_call_operand.vmem [shape: f32[1,32], index: 8, kind: input, shape index: {}]
  %s9 = inlined_call_operand.vmem [shape: f32[1,32], index: 9, kind: input, shape index: {}]
  %s10 = inlined_call_operand.hbm [shape: bf16[32,128], index: 10, kind: input, shape index: {}]
  %s11 = inlined_call_operand.hbm [shape: f32[1,128], index: 11, kind: input, shape index: {}]
  %s12 = inlined_call_operand.vmem [shape: bf16[128,32], index: 12, kind: input, shape index: {}]
  %s13 = inlined_call_operand.vmem [shape: f32[1,32], index: 13, kind: input, shape index: {}]
  %s14 = inlined_call_operand.hbm [shape: f32[2,8,32], index: 14, kind: output, shape index: {}]
  %s15 = sld [smem:[#allocation0]]
  $region97: #{tpu_custom_call.1} parent=0
    _
  %s17 = ssub.s32 1, %s15
  %s18 = scalar_select 0, %s17, %s15
  $region1: #{tpu_custom_call.1} parent=0
    #allocation2 [shape = 'u8[8192]{0}', space=vmem, size = 0x2000, scoped, tag = 'input window, operand 10, single buffered']
    #allocation3 [shape = 's32[2]{0}', space=sflag, size = 0x8, scoped, tag = 'scoped memory for tpu_custom_call.1']
    #allocation4 [shape = 's32[2]{0}', space=sflag, size = 0x8, scoped, tag = 'scoped memory for tpu_custom_call.1']
    #allocation5 [shape = 'u8[512]{0}', space=vmem, size = 0x400, scoped, tag = 'input window, operand 11, single buffered']
    #allocation6 [shape = 's32[1]{0}', space=sflag, size = 0x4, scoped, tag = 'scoped memory for tpu_custom_call.1']
    #allocation7 [shape = 'u8[8192]{0}', space=vmem, size = 0x2000, scoped, tag = 'output window, operand 0']
    %19 = vsyncpa [#allocation3], 0
    %20 = vsyncpa [#allocation6], 0
    %21 = vsyncpa [#allocation4], 0
    %s22 = scalar_lea.sflag [#allocation4], 1
    %23 = vsyncpa %s22, 0
    loop: start=0, step=1, limit=4
    $region2: #{tpu_custom_call.1} parent=1 // loop_pre_header
      _
    $region3: #{tpu_custom_call.1} parent=1 // loop_header
      %s25 = sphi 0, %s29
      %p26 = scmp.ge.s32.totalorder %s25, 4
      %s35 = sphi 0, %s37
      %s38 = sphi 0, %s35
      %s39 = sphi 0, %s38
      %s55 = sphi 0, %s39
      %s59 = sphi 0, %s59
      %s61 = sphi 0, %s59
      %s62 = sphi 0, %s61
      %s76 = sphi 0, %s62
      %s80 = sphi 0, %s80
      %s82 = sphi 0, %s80
      %s83 = sphi 0, %s82
      %s97 = sphi 0, %s83
      %s101 = sphi 0, %s101
      %s103 = sphi 0, %s101
      %s104 = sphi 0, %s103
      %s118 = sphi 0, %s104
      %s122 = sphi 0, %s122
      %s124 = sphi 0, %s122
      %s125 = sphi 0, %s124
      %s139 = sphi 0, %s125
      %s143 = sphi 0, %s143
      %s145 = sphi 0, %s143
      %s146 = sphi 0, %s145
      %s160 = sphi 0, %s146
      %s164 = sphi 0, %s164
      %s166 = sphi 0, %s164
      %s167 = sphi 0, %s166
      %s181 = sphi 0, %s167
      %s185 = sphi 0, %s185
      %s187 = sphi 0, %s185
      %s188 = sphi 0, %s187
      %s202 = sphi 0, %s188
      %s206 = sphi 0, %s206
      %s208 = sphi 0, %s206
      %s209 = sphi 0, %s208
      %s223 = sphi 0, %s209
      %s227 = sphi 0, %s227
      %s229 = sphi 0, %s227
      %s230 = sphi 0, %s229
      %s244 = sphi 0, %s230
      %s248 = sphi 0, %s248
      %s250 = sphi 0, %s248
      %s251 = sphi 0, %s250
      %s265 = sphi 0, %s251
      %s269 = sphi 0, %s269
      %s271 = sphi 0, %s269
      %s272 = sphi 0, %s271
      %s286 = sphi 0, %s272
      %s290 = sphi 0, %s290
      %s292 = sphi 0, %s290
      %s293 = sphi 0, %s292
      %s307 = sphi 0, %s293
      %s311 = sphi 0, %s311
      %s313 = sphi 0, %s311
      %s314 = sphi 0, %s313
      %s328 = sphi 0, %s314
      %s334 = sphi 0, %s336
      %s337 = sphi 0, %s334
      %s338 = sphi 0, %s337
      %s354 = sphi 0, %s338
    $region4: #{tpu_custom_call.1} parent=1 // loop_header_branch
      %28 = sbr.rel (%p26) target = $region8
    $region5: #{tpu_custom_call.1} parent=1 // loop_body
      %s30 = ssub.s32 %s25, 1
      %s31 = ssub.s32 %s25, 2
      %s32 = sadd.s32 %s25, 1
      %s33 = ssub.s32 %s25, %s32
      %p34 = scmp.eq.s32.totalorder %s33, 0
      %s36 = sadd.s32 %s35, 1
      %s37 = scalar_select %p34, %s35, %s36
      %p40 = pneg %p34
      %p41 = scmp.eq.s32.totalorder %s25, 1
      %p42 = por %p40, %p41
      %p43 = scmp.ne.s32.totalorder %s35, %s38
      %p44 = scmp.eq.s32.totalorder %s25, 0
      %p45 = por %p43, %p44
      %p46 = scmp.ne.s32.totalorder %s35, %s38
      %p47 = scmp.eq.s32.totalorder %s30, 1
      %p48 = por %p46, %p47
      %p49 = scmp.ne.s32.totalorder %s38, %s39
      %p50 = scmp.eq.s32.totalorder %s30, 0
      %p51 = por %p49, %p50
      %p52 = scmp.ne.s32.totalorder %s38, %s39
      %p53 = scmp.eq.s32.totalorder %s31, 1
      %p54 = por %p52, %p53
      %p56 = scmp.ne.s32.totalorder %s39, %s55
      %p57 = scmp.eq.s32.totalorder %s31, 0
      %p58 = por %p56, %p57
      %s60 = sadd.s32 %s59, 1
      %p63 = scmp.eq.s32.totalorder %s25, 1
      %p64 = scmp.ne.s32.totalorder %s59, %s61
      %p65 = scmp.eq.s32.totalorder %s25, 0
      %p66 = por %p64, %p65
      %p67 = scmp.ne.s32.totalorder %s59, %s61
      %p68 = scmp.eq.s32.totalorder %s30, 1
      %p69 = por %p67, %p68
      %p70 = scmp.ne.s32.totalorder %s61, %s62
      %p71 = scmp.eq.s32.totalorder %s30, 0
      %p72 = por %p70, %p71
      %p73 = scmp.ne.s32.totalorder %s61, %s62
      %p74 = scmp.eq.s32.totalorder %s31, 1
      %p75 = por %p73, %p74
      %p77 = scmp.ne.s32.totalorder %s62, %s76
      %p78 = scmp.eq.s32.totalorder %s31, 0
      %p79 = por %p77, %p78
      %s81 = sadd.s32 %s80, 1
      %p84 = scmp.eq.s32.totalorder %s25, 1
      %p85 = scmp.ne.s32.totalorder %s80, %s82
      %p86 = scmp.eq.s32.totalorder %s25, 0
      %p87 = por %p85, %p86
      %p88 = scmp.ne.s32.totalorder %s80, %s82
      %p89 = scmp.eq.s32.totalorder %s30, 1
      %p90 = por %p88, %p89
      %p91 = scmp.ne.s32.totalorder %s82, %s83
      %p92 = scmp.eq.s32.totalorder %s30, 0
      %p93 = por %p91, %p92
      %p94 = scmp.ne.s32.totalorder %s82, %s83
      %p95 = scmp.eq.s32.totalorder %s31, 1
      %p96 = por %p94, %p95
      %p98 = scmp.ne.s32.totalorder %s83, %s97
      %p99 = scmp.eq.s32.totalorder %s31, 0
      %p100 = por %p98, %p99
      %s102 = sadd.s32 %s101, 1
      %p105 = scmp.eq.s32.totalorder %s25, 1
      %p106 = scmp.ne.s32.totalorder %s101, %s103
      %p107 = scmp.eq.s32.totalorder %s25, 0
      %p108 = por %p106, %p107
      %p109 = scmp.ne.s32.totalorder %s101, %s103
      %p110 = scmp.eq.s32.totalorder %s30, 1
      %p111 = por %p109, %p110
      %p112 = scmp.ne.s32.totalorder %s103, %s104
      %p113 = scmp.eq.s32.totalorder %s30, 0
      %p114 = por %p112, %p113
      %p115 = scmp.ne.s32.totalorder %s103, %s104
      %p116 = scmp.eq.s32.totalorder %s31, 1
      %p117 = por %p115, %p116
      %p119 = scmp.ne.s32.totalorder %s104, %s118
      %p120 = scmp.eq.s32.totalorder %s31, 0
      %p121 = por %p119, %p120
      %s123 = sadd.s32 %s122, 1
      %p126 = scmp.eq.s32.totalorder %s25, 1
      %p127 = scmp.ne.s32.totalorder %s122, %s124
      %p128 = scmp.eq.s32.totalorder %s25, 0
      %p129 = por %p127, %p128
      %p130 = scmp.ne.s32.totalorder %s122, %s124
      %p131 = scmp.eq.s32.totalorder %s30, 1
      %p132 = por %p130, %p131
      %p133 = scmp.ne.s32.totalorder %s124, %s125
      %p134 = scmp.eq.s32.totalorder %s30, 0
      %p135 = por %p133, %p134
      %p136 = scmp.ne.s32.totalorder %s124, %s125
      %p137 = scmp.eq.s32.totalorder %s31, 1
      %p138 = por %p136, %p137
      %p140 = scmp.ne.s32.totalorder %s125, %s139
      %p141 = scmp.eq.s32.totalorder %s31, 0
      %p142 = por %p140, %p141
      %s144 = sadd.s32 %s143, 1
      %p147 = scmp.eq.s32.totalorder %s25, 1
      %p148 = scmp.ne.s32.totalorder %s143, %s145
      %p149 = scmp.eq.s32.totalorder %s25, 0
      %p150 = por %p148, %p149
      %p151 = scmp.ne.s32.totalorder %s143, %s145
      %p152 = scmp.eq.s32.totalorder %s30, 1
      %p153 = por %p151, %p152
      %p154 = scmp.ne.s32.totalorder %s145, %s146
      %p155 = scmp.eq.s32.totalorder %s30, 0
      %p156 = por %p154, %p155
      %p157 = scmp.ne.s32.totalorder %s145, %s146
      %p158 = scmp.eq.s32.totalorder %s31, 1
      %p159 = por %p157, %p158
      %p161 = scmp.ne.s32.totalorder %s146, %s160
      %p162 = scmp.eq.s32.totalorder %s31, 0
      %p163 = por %p161, %p162
      %s165 = sadd.s32 %s164, 1
      %p168 = scmp.eq.s32.totalorder %s25, 1
      %p169 = scmp.ne.s32.totalorder %s164, %s166
      %p170 = scmp.eq.s32.totalorder %s25, 0
      %p171 = por %p169, %p170
      %p172 = scmp.ne.s32.totalorder %s164, %s166
      %p173 = scmp.eq.s32.totalorder %s30, 1
      %p174 = por %p172, %p173
      %p175 = scmp.ne.s32.totalorder %s166, %s167
      %p176 = scmp.eq.s32.totalorder %s30, 0
      %p177 = por %p175, %p176
      %p178 = scmp.ne.s32.totalorder %s166, %s167
      %p179 = scmp.eq.s32.totalorder %s31, 1
      %p180 = por %p178, %p179
      %p182 = scmp.ne.s32.totalorder %s167, %s181
      %p183 = scmp.eq.s32.totalorder %s31, 0
      %p184 = por %p182, %p183
      %s186 = sadd.s32 %s185, 1
      %p189 = scmp.eq.s32.totalorder %s25, 1
      %p190 = scmp.ne.s32.totalorder %s185, %s187
      %p191 = scmp.eq.s32.totalorder %s25, 0
      %p192 = por %p190, %p191
      %p193 = scmp.ne.s32.totalorder %s185, %s187
      %p194 = scmp.eq.s32.totalorder %s30, 1
      %p195 = por %p193, %p194
      %p196 = scmp.ne.s32.totalorder %s187, %s188
      %p197 = scmp.eq.s32.totalorder %s30, 0
      %p198 = por %p196, %p197
      %p199 = scmp.ne.s32.totalorder %s187, %s188
      %p200 = scmp.eq.s32.totalorder %s31, 1
      %p201 = por %p199, %p200
      %p203 = scmp.ne.s32.totalorder %s188, %s202
      %p204 = scmp.eq.s32.totalorder %s31, 0
      %p205 = por %p203, %p204
      %s207 = sadd.s32 %s206, 1
      %p210 = scmp.eq.s32.totalorder %s25, 1
      %p211 = scmp.ne.s32.totalorder %s206, %s208
      %p212 = scmp.eq.s32.totalorder %s25, 0
      %p213 = por %p211, %p212
      %p214 = scmp.ne.s32.totalorder %s206, %s208
      %p215 = scmp.eq.s32.totalorder %s30, 1
      %p216 = por %p214, %p215
      %p217 = scmp.ne.s32.totalorder %s208, %s209
      %p218 = scmp.eq.s32.totalorder %s30, 0
      %p219 = por %p217, %p218
      %p220 = scmp.ne.s32.totalorder %s208, %s209
      %p221 = scmp.eq.s32.totalorder %s31, 1
      %p222 = por %p220, %p221
      %p224 = scmp.ne.s32.totalorder %s209, %s223
      %p225 = scmp.eq.s32.totalorder %s31, 0
      %p226 = por %p224, %p225
      %s228 = sadd.s32 %s227, 1
      %p231 = scmp.eq.s32.totalorder %s25, 1
      %p232 = scmp.ne.s32.totalorder %s227, %s229
      %p233 = scmp.eq.s32.totalorder %s25, 0
      %p234 = por %p232, %p233
      %p235 = scmp.ne.s32.totalorder %s227, %s229
      %p236 = scmp.eq.s32.totalorder %s30, 1
      %p237 = por %p235, %p236
      %p238 = scmp.ne.s32.totalorder %s229, %s230
      %p239 = scmp.eq.s32.totalorder %s30, 0
      %p240 = por %p238, %p239
      %p241 = scmp.ne.s32.totalorder %s229, %s230
      %p242 = scmp.eq.s32.totalorder %s31, 1
      %p243 = por %p241, %p242
      %p245 = scmp.ne.s32.totalorder %s230, %s244
      %p246 = scmp.eq.s32.totalorder %s31, 0
      %p247 = por %p245, %p246
      %s249 = sadd.s32 %s248, 1
      %p252 = scmp.eq.s32.totalorder %s25, 1
      %p253 = scmp.ne.s32.totalorder %s248, %s250
      %p254 = scmp.eq.s32.totalorder %s25, 0
      %p255 = por %p253, %p254
      %p256 = scmp.ne.s32.totalorder %s248, %s250
      %p257 = scmp.eq.s32.totalorder %s30, 1
      %p258 = por %p256, %p257
      %p259 = scmp.ne.s32.totalorder %s250, %s251
      %p260 = scmp.eq.s32.totalorder %s30, 0
      %p261 = por %p259, %p260
      %p262 = scmp.ne.s32.totalorder %s250, %s251
      %p263 = scmp.eq.s32.totalorder %s31, 1
      %p264 = por %p262, %p263
      %p266 = scmp.ne.s32.totalorder %s251, %s265
      %p267 = scmp.eq.s32.totalorder %s31, 0
      %p268 = por %p266, %p267
      %s270 = sadd.s32 %s269, 1
      %p273 = scmp.eq.s32.totalorder %s25, 1
      %p274 = scmp.ne.s32.totalorder %s269, %s271
      %p275 = scmp.eq.s32.totalorder %s25, 0
      %p276 = por %p274, %p275
      %p277 = scmp.ne.s32.totalorder %s269, %s271
      %p278 = scmp.eq.s32.totalorder %s30, 1
      %p279 = por %p277, %p278
      %p280 = scmp.ne.s32.totalorder %s271, %s272
      %p281 = scmp.eq.s32.totalorder %s30, 0
      %p282 = por %p280, %p281
      %p283 = scmp.ne.s32.totalorder %s271, %s272
      %p284 = scmp.eq.s32.totalorder %s31, 1
      %p285 = por %p283, %p284
      %p287 = scmp.ne.s32.totalorder %s272, %s286
      %p288 = scmp.eq.s32.totalorder %s31, 0
      %p289 = por %p287, %p288
      %s291 = sadd.s32 %s290, 1
      %p294 = scmp.eq.s32.totalorder %s25, 1
      %p295 = scmp.ne.s32.totalorder %s290, %s292
      %p296 = scmp.eq.s32.totalorder %s25, 0
      %p297 = por %p295, %p296
      %p298 = scmp.ne.s32.totalorder %s290, %s292
      %p299 = scmp.eq.s32.totalorder %s30, 1
      %p300 = por %p298, %p299
      %p301 = scmp.ne.s32.totalorder %s292, %s293
      %p302 = scmp.eq.s32.totalorder %s30, 0
      %p303 = por %p301, %p302
      %p304 = scmp.ne.s32.totalorder %s292, %s293
      %p305 = scmp.eq.s32.totalorder %s31, 1
      %p306 = por %p304, %p305
      %p308 = scmp.ne.s32.totalorder %s293, %s307
      %p309 = scmp.eq.s32.totalorder %s31, 0
      %p310 = por %p308, %p309
      %s312 = sadd.s32 %s311, 1
      %p315 = scmp.eq.s32.totalorder %s25, 1
      %p316 = scmp.ne.s32.totalorder %s311, %s313
      %p317 = scmp.eq.s32.totalorder %s25, 0
      %p318 = por %p316, %p317
      %p319 = scmp.ne.s32.totalorder %s311, %s313
      %p320 = scmp.eq.s32.totalorder %s30, 1
      %p321 = por %p319, %p320
      %p322 = scmp.ne.s32.totalorder %s313, %s314
      %p323 = scmp.eq.s32.totalorder %s30, 0
      %p324 = por %p322, %p323
      %p325 = scmp.ne.s32.totalorder %s313, %s314
      %p326 = scmp.eq.s32.totalorder %s31, 1
      %p327 = por %p325, %p326
      %p329 = scmp.ne.s32.totalorder %s314, %s328
      %p330 = scmp.eq.s32.totalorder %s31, 0
      %p331 = por %p329, %p330
      %s332 = ssub.s32 %s25, %s32
      %p333 = scmp.eq.s32.totalorder %s332, 0
      %s335 = sadd.s32 %s334, 1
      %s336 = scalar_select %p333, %s334, %s335
      %p339 = pneg %p333
      %p340 = scmp.eq.s32.totalorder %s25, 1
      %p341 = por %p339, %p340
      %p342 = scmp.ne.s32.totalorder %s334, %s337
      %p343 = scmp.eq.s32.totalorder %s25, 0
      %p344 = por %p342, %p343
      %p345 = scmp.ne.s32.totalorder %s334, %s337
      %p346 = scmp.eq.s32.totalorder %s30, 1
      %p347 = por %p345, %p346
      %p348 = scmp.ne.s32.totalorder %s337, %s338
      %p349 = scmp.eq.s32.totalorder %s30, 0
      %p350 = por %p348, %p349
      %p351 = scmp.ne.s32.totalorder %s337, %s338
      %p352 = scmp.eq.s32.totalorder %s31, 1
      %p353 = por %p351, %p352
      %p355 = scmp.ne.s32.totalorder %s338, %s354
      %p356 = scmp.eq.s32.totalorder %s31, 0
      %p357 = por %p355, %p356
      %p358 = scmp.le.s32.totalorder 1, %s25
      %p359 = scmp.lt.s32.totalorder %s25, 3
      %p360 = pnand %p358, %p359
      %p361 = pneg %p360
      // Predicated region
      $region9: #{tpu_custom_call.1} parent=5 // pred_check
        _
      $region10: #{tpu_custom_call.1} parent=5 // pred_check_branch
        %363 = sbr.rel (%p360) target = $region12
      $region11: #{tpu_custom_call.1} parent=5 // pred_region
        %s364 = ssub.s32 %s25, 1
        // Predicated region
        $region13: #{tpu_custom_call.1} parent=11 // pred_check
          %p365 = pneg %p72
        $region14: #{tpu_custom_call.1} parent=11 // pred_check_branch
          %367 = sbr.rel (%p365) target = $region16
        $region15: #{tpu_custom_call.1} parent=11 // pred_region
          _
        $region16: #{tpu_custom_call.1} parent=11 // pred_fallthru
          _
        // Predicated region
        $region17: #{tpu_custom_call.1} parent=11 // pred_check
          %p368 = pneg %p93
        $region18: #{tpu_custom_call.1} parent=11 // pred_check_branch
          %370 = sbr.rel (%p368) target = $region20
        $region19: #{tpu_custom_call.1} parent=11 // pred_region
          _
        $region20: #{tpu_custom_call.1} parent=11 // pred_fallthru
          _
        // Predicated region
        $region21: #{tpu_custom_call.1} parent=11 // pred_check
          %p371 = pneg %p114
        $region22: #{tpu_custom_call.1} parent=11 // pred_check_branch
          %373 = sbr.rel (%p371) target = $region24
        $region23: #{tpu_custom_call.1} parent=11 // pred_region
          _
        $region24: #{tpu_custom_call.1} parent=11 // pred_fallthru
          _
        // Predicated region
        $region25: #{tpu_custom_call.1} parent=11 // pred_check
          %p374 = pneg %p135
        $region26: #{tpu_custom_call.1} parent=11 // pred_check_branch
          %376 = sbr.rel (%p374) target = $region28
        $region27: #{tpu_custom_call.1} parent=11 // pred_region
          _
        $region28: #{tpu_custom_call.1} parent=11 // pred_fallthru
          _
        // Predicated region
        $region29: #{tpu_custom_call.1} parent=11 // pred_check
          %p377 = pneg %p156
        $region30: #{tpu_custom_call.1} parent=11 // pred_check_branch
          %379 = sbr.rel (%p377) target = $region32
        $region31: #{tpu_custom_call.1} parent=11 // pred_region
          _
        $region32: #{tpu_custom_call.1} parent=11 // pred_fallthru
          _
        // Predicated region
        $region33: #{tpu_custom_call.1} parent=11 // pred_check
          %p380 = pneg %p177
        $region34: #{tpu_custom_call.1} parent=11 // pred_check_branch
          %382 = sbr.rel (%p380) target = $region36
        $region35: #{tpu_custom_call.1} parent=11 // pred_region
          _
        $region36: #{tpu_custom_call.1} parent=11 // pred_fallthru
          _
        // Predicated region
        $region37: #{tpu_custom_call.1} parent=11 // pred_check
          %p383 = pneg %p198
        $region38: #{tpu_custom_call.1} parent=11 // pred_check_branch
          %385 = sbr.rel (%p383) target = $region40
        $region39: #{tpu_custom_call.1} parent=11 // pred_region
          _
        $region40: #{tpu_custom_call.1} parent=11 // pred_fallthru
          _
        // Predicated region
        $region41: #{tpu_custom_call.1} parent=11 // pred_check
          %p386 = pneg %p219
        $region42: #{tpu_custom_call.1} parent=11 // pred_check_branch
          %388 = sbr.rel (%p386) target = $region44
        $region43: #{tpu_custom_call.1} parent=11 // pred_region
          _
        $region44: #{tpu_custom_call.1} parent=11 // pred_fallthru
          _
        // Predicated region
        $region45: #{tpu_custom_call.1} parent=11 // pred_check
          %p389 = pneg %p240
        $region46: #{tpu_custom_call.1} parent=11 // pred_check_branch
          %391 = sbr.rel (%p389) target = $region48
        $region47: #{tpu_custom_call.1} parent=11 // pred_region
          _
        $region48: #{tpu_custom_call.1} parent=11 // pred_fallthru
          _
        // Predicated region
        $region49: #{tpu_custom_call.1} parent=11 // pred_check
          %p392 = pneg %p261
        $region50: #{tpu_custom_call.1} parent=11 // pred_check_branch
          %394 = sbr.rel (%p392) target = $region52
        $region51: #{tpu_custom_call.1} parent=11 // pred_region
          %s396 = ssub.s32 256, 256
          %397 = vsyncadd [#allocation3], %s396
          %s398 = sshll.u32 [#allocation2], 4
          %s399 = int_to_ptr.vmem [resolvable:$true] %s398
          %404 = dma.hbm_to_vmem [thread:$0]  %s10, 256, %s399, [#allocation3], 64, 64, 4
        $region52: #{tpu_custom_call.1} parent=11 // pred_fallthru
          _
        // Predicated region
        $region53: #{tpu_custom_call.1} parent=11 // pred_check
          %p405 = pneg %p282
        $region54: #{tpu_custom_call.1} parent=11 // pred_check_branch
          %407 = sbr.rel (%p405) target = $region56
        $region55: #{tpu_custom_call.1} parent=11 // pred_region
          %s409 = ssub.s32 16, 16
          %410 = vsyncadd [#allocation6], %s409
          %s412 = sshll.u32 [#allocation5], 4
          %s413 = int_to_ptr.vmem [resolvable:$true] %s412
          %415 = dma.hbm_to_vmem [thread:$0]  %s11, 16, %s413, [#allocation6]
        $region56: #{tpu_custom_call.1} parent=11 // pred_fallthru
          _
        // Predicated region
        $region57: #{tpu_custom_call.1} parent=11 // pred_check
          %p416 = pneg %p303
        $region58: #{tpu_custom_call.1} parent=11 // pred_check_branch
          %418 = sbr.rel (%p416) target = $region60
        $region59: #{tpu_custom_call.1} parent=11 // pred_region
          _
        $region60: #{tpu_custom_call.1} parent=11 // pred_fallthru
          _
        // Predicated region
        $region61: #{tpu_custom_call.1} parent=11 // pred_check
          %p419 = pneg %p324
        $region62: #{tpu_custom_call.1} parent=11 // pred_check_branch
          %421 = sbr.rel (%p419) target = $region64
        $region63: #{tpu_custom_call.1} parent=11 // pred_region
          _
        $region64: #{tpu_custom_call.1} parent=11 // pred_fallthru
          _
      $region12: #{tpu_custom_call.1} parent=5 // pred_fallthru
        _
      %p422 = scmp.lt.s32.totalorder %s25, 2
      // Predicated region
      $region65: #{tpu_custom_call.1} parent=5 // pred_check
        %p423 = pneg %p422
      $region66: #{tpu_custom_call.1} parent=5 // pred_check_branch
        %425 = sbr.rel (%p423) target = $region68
      $region67: #{tpu_custom_call.1} parent=5 // pred_region
        // Predicated region
        $region69: #{tpu_custom_call.1} parent=67 // pred_check
          %p426 = pneg %p45
        $region70: #{tpu_custom_call.1} parent=67 // pred_check_branch
          %428 = sbr.rel (%p426) target = $region72
        $region71: #{tpu_custom_call.1} parent=67 // pred_region
          %p429 = scmp.lt.s32.totalorder %s25, 1
          %s430 = scalar_select %p429, %s25, 1
          %s431 = smul.addr %s430, 8
          %s432 = scalar_lea.vmem %s0, %s431
        $region72: #{tpu_custom_call.1} parent=67 // pred_fallthru
          _
      $region68: #{tpu_custom_call.1} parent=5 // pred_fallthru
        _
      %p433 = scmp.le.s32.totalorder 1, %s25
      %p434 = scmp.lt.s32.totalorder %s25, 3
      %p435 = pnand %p433, %p434
      %p436 = pneg %p435
      // Predicated region
      $region73: #{tpu_custom_call.1} parent=5 // pred_check
        _
      $region74: #{tpu_custom_call.1} parent=5 // pred_check_branch
        %438 = sbr.rel (%p435) target = $region76
      $region75: #{tpu_custom_call.1} parent=5 // pred_region
        %s439 = ssub.s32 %s25, 1
        // Predicated region
        $region77: #{tpu_custom_call.1} parent=75 // pred_check
          %p440 = pneg %p261
        $region78: #{tpu_custom_call.1} parent=75 // pred_check_branch
          %442 = sbr.rel (%p440) target = $region80
        $region79: #{tpu_custom_call.1} parent=75 // pred_region
          %443 = dma.done [#allocation3], 256
        $region80: #{tpu_custom_call.1} parent=75 // pred_fallthru
          _
        // Predicated region
        $region81: #{tpu_custom_call.1} parent=75 // pred_check
          %p444 = pneg %p282
        $region82: #{tpu_custom_call.1} parent=75 // pred_check_branch
          %446 = sbr.rel (%p444) target = $region84
        $region83: #{tpu_custom_call.1} parent=75 // pred_region
          %447 = dma.done [#allocation6], 16
        $region84: #{tpu_custom_call.1} parent=75 // pred_fallthru
          _
        %p448 = scmp.lt.s32.totalorder %s30, 1
        %s449 = scalar_select %p448, %s30, 1
        %s450 = smul.addr %s449, 8
        %s451 = scalar_lea.vmem %s0, %s450
        %p452 = pneg %p51
        %p453 = pneg %p48
        %p454 = pneg %p72
        %p455 = pneg %p69
        %p456 = pneg %p93
        %p457 = pneg %p90
        %p458 = pneg %p114
        %p459 = pneg %p111
        %p460 = pneg %p135
        %p461 = pneg %p132
        %p462 = pneg %p156
        %p463 = pneg %p153
        %p464 = pneg %p177
        %p465 = pneg %p174
        %p466 = pneg %p198
        %p467 = pneg %p195
        %p468 = pneg %p219
        %p469 = pneg %p216
        %p470 = pneg %p240
        %p471 = pneg %p237
        %p472 = pneg %p261
        %p473 = pneg %p258
        %p474 = pneg %p282
        %p475 = pneg %p279
        %p476 = pneg %p303
        %p477 = pneg %p300
        %p478 = pneg %p324
        %p479 = pneg %p321
        %p480 = pneg %p350
        %p481 = pneg %p347
        %s482 = sand.u32 %s337, 1
        %s483 = scalar_lea.sflag [#allocation4], %s482
        %s484 = sand.u32 %s337, 1
        %s485 = smul.addr %s484, 8
        %s486 = scalar_lea.vmem [#allocation7], %s485
        %p487 = scmp.lt.s32.totalorder %s30, 1
        %s488 = scalar_select %p487, %s30, 1
        %s489 = smul.addr %s488, 8
        %s490 = scalar_lea.vmem %s0, %s489
        %v492 = vld [vmem:[%s490] sm:$0xff]
        %v493 = vld [vmem:[%s1] sm:$0x1]
        %v494 = vld [vmem:[%s2] sm:$0x1]
        %vm495 = vcmask 261120
        %v496 = vsel %vm495, %v492, 0.0
        %497 = vadd.xlane.f32.xlu0 %v496
        %v498 = vpop.xlane.xlu0 %497
        %v499 = vrcp.pop 32.0
        %v500 = vmul.f32 %v498, %v499
        %v501 = vsub.f32 %v492, %v500
        %v502 = vmul.f32 %v501, %v501
        %v503 = vsel %vm495, %v502, 0.0
        %504 = vadd.xlane.f32.xlu0 %v503
        %v505 = vpop.xlane.xlu0 %504
        %v506 = vmul.f32 %v505, %v499
        %v507 = vadd.f32 %v506, 1e-05
        %v508 = vrsqrt.pop %v507
        %v509 = vmul.f32 %v501, %v508
        %v511 = vlaneseq
        %v512 = vshrl.u32 %v511, 7
        %v513 = vsub.s32 0, %v512
        %v514 = vrot.slane %v493, %v513
        %v516 = vmul.f32 %v509, %v514
        %v518 = vlaneseq
        %v519 = vshrl.u32 %v518, 7
        %v520 = vsub.s32 0, %v519
        %v521 = vrot.slane %v494, %v520
        %v523 = vadd.f32 %v516, %v521
        %v524 = vpack.c.bf16 %v523, %v523
        %v525 = vld [vmem:[%s3] sm:$0xf]
        %v526 = vld [vmem:[%s3 + $0x4] sm:$0xf]
        %v527 = vld [vmem:[%s3 + $0x8] sm:$0xf]
        %v528 = vld [vmem:[%s3 + $0xc] sm:$0xf]
        %v533 = vunpack.c.l.b16 %v525
        %v534 = vunpack.c.l.b16 %v526
        %v535 = vunpack.c.l.b16 %v527
        %v536 = vunpack.c.l.b16 %v528
        %v537 = vpack.c.b16 %v534, %v533
        %v538 = vpack.c.b16 %v536, %v535
        %v542 = vsel %vm495, %v524, 0
        %544 = vmatprep.subr.bf16.mxu0 0
        %545 = vmatpush1.bf16.msra.mxu0 0
        %546 = vmatprep.subr.bf16.mxu0 0
        %547 = vmatpush1.bf16.msra.mxu0 0
        %548 = vmatprep.subr.bf16.mxu0 0
        %549 = vmatpush1.bf16.msra.mxu0 0
        %550 = vmatprep.subr.bf16.mxu0 0
        %551 = vmatpush1.bf16.msra.mxu0 0
        %552 = vmatprep.subr.bf16.mxu0 0
        %553 = vmatpush1.bf16.msra.mxu0 0
        %554 = vmatprep.subr.bf16.mxu0 0
        %555 = vmatpush1.bf16.msra.mxu0 0
        %556 = vmatprep.subr.bf16.mxu0 0
        %557 = vmatpush1.bf16.msra.mxu0 %v538
        %558 = vmatprep.subr.bf16.mxu0 0
        %559 = vmatpush1.bf16.msra.mxu0 %v537
        %560 = vmatprep.subr.bf16.mxu0 0
        %561 = vmatpush2.bf16.msra.mxu0 0
        %562 = vmatprep.subr.bf16.mxu0 0
        %563 = vmatpush2.bf16.msra.mxu0 0
        %564 = vmatprep.subr.bf16.mxu0 0
        %565 = vmatpush2.bf16.msra.mxu0 0
        %566 = vmatprep.subr.bf16.mxu0 0
        %567 = vmatpush2.bf16.msra.mxu0 0
        %568 = vmatprep.subr.bf16.mxu0 0
        %569 = vmatpush2.bf16.msra.mxu0 0
        %570 = vmatprep.subr.bf16.mxu0 0
        %571 = vmatpush2.bf16.msra.mxu0 0
        %572 = vmatprep.subr.bf16.mxu0 0
        %573 = vmatpush2.bf16.msra.mxu0 0
        %574 = vmatprep.subr.bf16.mxu0 0
        %575 = vmatpush2.bf16.msra.mxu0 0
        %576 = vmatprep.mubr.bf16.mxu0 0
        %577 = vmatmul.mubr.bf16.gmra.mxu0 %v542
        %v578 = vpop.f32.mrf.mxu0
        %v579 = vadd.f32 0.0, %v578
        %v580 = vpop.f32.mrf.mxu0
        %v581 = vpop.f32.mrf.mxu0
        %v582 = vpop.f32.mrf.mxu0
        %583 = vdwg.mxu0
        %v584 = vld [vmem:[%s4] sm:$0xf]
        %v585 = vld [vmem:[%s4 + $0x4] sm:$0xf]
        %v586 = vld [vmem:[%s4 + $0x8] sm:$0xf]
        %v587 = vld [vmem:[%s4 + $0xc] sm:$0xf]
        %v592 = vunpack.c.l.b16 %v584
        %v593 = vunpack.c.l.b16 %v585
        %v594 = vunpack.c.l.b16 %v586
        %v595 = vunpack.c.l.b16 %v587
        %v596 = vpack.c.b16 %v593, %v592
        %v597 = vpack.c.b16 %v595, %v594
        %600 = vmatprep.subr.bf16.mxu0 0
        %601 = vmatpush1.bf16.msra.mxu0 0
        %602 = vmatprep.subr.bf16.mxu0 0
        %603 = vmatpush1.bf16.msra.mxu0 0
        %604 = vmatprep.subr.bf16.mxu0 0
        %605 = vmatpush1.bf16.msra.mxu0 0
        %606 = vmatprep.subr.bf16.mxu0 0
        %607 = vmatpush1.bf16.msra.mxu0 0
        %608 = vmatprep.subr.bf16.mxu0 0
        %609 = vmatpush1.bf16.msra.mxu0 0
        %610 = vmatprep.subr.bf16.mxu0 0
        %611 = vmatpush1.bf16.msra.mxu0 0
        %612 = vmatprep.subr.bf16.mxu0 0
        %613 = vmatpush1.bf16.msra.mxu0 %v597
        %614 = vmatprep.subr.bf16.mxu0 0
        %615 = vmatpush1.bf16.msra.mxu0 %v596
        %616 = vmatprep.subr.bf16.mxu0 0
        %617 = vmatpush2.bf16.msra.mxu0 0
        %618 = vmatprep.subr.bf16.mxu0 0
        %619 = vmatpush2.bf16.msra.mxu0 0
        %620 = vmatprep.subr.bf16.mxu0 0
        %621 = vmatpush2.bf16.msra.mxu0 0
        %622 = vmatprep.subr.bf16.mxu0 0
        %623 = vmatpush2.bf16.msra.mxu0 0
        %624 = vmatprep.subr.bf16.mxu0 0
        %625 = vmatpush2.bf16.msra.mxu0 0
        %626 = vmatprep.subr.bf16.mxu0 0
        %627 = vmatpush2.bf16.msra.mxu0 0
        %628 = vmatprep.subr.bf16.mxu0 0
        %629 = vmatpush2.bf16.msra.mxu0 0
        %630 = vmatprep.subr.bf16.mxu0 0
        %631 = vmatpush2.bf16.msra.mxu0 0
        %632 = vmatprep.mubr.bf16.mxu0 0
        %633 = vmatmul.mubr.bf16.gmra.mxu0 %v542
        %v634 = vpop.f32.mrf.mxu0
        %v635 = vadd.f32 0.0, %v634
        %v636 = vpop.f32.mrf.mxu0
        %v637 = vpop.f32.mrf.mxu0
        %v638 = vpop.f32.mrf.mxu0
        %639 = vdwg.mxu0
        %v640 = vld [vmem:[%s5] sm:$0xf]
        %v641 = vld [vmem:[%s5 + $0x4] sm:$0xf]
        %v642 = vld [vmem:[%s5 + $0x8] sm:$0xf]
        %v643 = vld [vmem:[%s5 + $0xc] sm:$0xf]
        %v648 = vunpack.c.l.b16 %v640
        %v649 = vunpack.c.l.b16 %v641
        %v650 = vunpack.c.l.b16 %v642
        %v651 = vunpack.c.l.b16 %v643
        %v652 = vpack.c.b16 %v649, %v648
        %v653 = vpack.c.b16 %v651, %v650
        %656 = vmatprep.subr.bf16.mxu0 0
        %657 = vmatpush1.bf16.msra.mxu0 0
        %658 = vmatprep.subr.bf16.mxu0 0
        %659 = vmatpush1.bf16.msra.mxu0 0
        %660 = vmatprep.subr.bf16.mxu0 0
        %661 = vmatpush1.bf16.msra.mxu0 0
        %662 = vmatprep.subr.bf16.mxu0 0
        %663 = vmatpush1.bf16.msra.mxu0 0
        %664 = vmatprep.subr.bf16.mxu0 0
        %665 = vmatpush1.bf16.msra.mxu0 0
        %666 = vmatprep.subr.bf16.mxu0 0
        %667 = vmatpush1.bf16.msra.mxu0 0
        %668 = vmatprep.subr.bf16.mxu0 0
        %669 = vmatpush1.bf16.msra.mxu0 %v653
        %670 = vmatprep.subr.bf16.mxu0 0
        %671 = vmatpush1.bf16.msra.mxu0 %v652
        %672 = vmatprep.subr.bf16.mxu0 0
        %673 = vmatpush2.bf16.msra.mxu0 0
        %674 = vmatprep.subr.bf16.mxu0 0
        %675 = vmatpush2.bf16.msra.mxu0 0
        %676 = vmatprep.subr.bf16.mxu0 0
        %677 = vmatpush2.bf16.msra.mxu0 0
        %678 = vmatprep.subr.bf16.mxu0 0
        %679 = vmatpush2.bf16.msra.mxu0 0
        %680 = vmatprep.subr.bf16.mxu0 0
        %681 = vmatpush2.bf16.msra.mxu0 0
        %682 = vmatprep.subr.bf16.mxu0 0
        %683 = vmatpush2.bf16.msra.mxu0 0
        %684 = vmatprep.subr.bf16.mxu0 0
        %685 = vmatpush2.bf16.msra.mxu0 0
        %686 = vmatprep.subr.bf16.mxu0 0
        %687 = vmatpush2.bf16.msra.mxu0 0
        %688 = vmatprep.mubr.bf16.mxu0 0
        %689 = vmatmul.mubr.bf16.gmra.mxu0 %v542
        %v690 = vpop.f32.mrf.mxu0
        %v691 = vadd.f32 0.0, %v690
        %v692 = vpop.f32.mrf.mxu0
        %v693 = vpop.f32.mrf.mxu0
        %v694 = vpop.f32.mrf.mxu0
        %695 = vdwg.mxu0
        %v696 = vpack.c.bf16 %v579, %v579
        %698 = vrot.lane.b32.xlu0 %v696, 120
        %v699 = vpop.permute.xlu0 %698
        %700 = vrot.lane.b32.xlu0 %v696, 112
        %v701 = vpop.permute.xlu0 %700
        %702 = vrot.lane.b32.xlu0 %v696, 104
        %v703 = vpop.permute.xlu0 %702
        %v705 = vunpack.c.l.s4 1983009808
        %v706 = vunpack.c.0.s8 %v705
        %v707 = vlaneseq
        %v708 = vshrl.u32 %v707, 7
        %v709 = vsub.s32 %v706, %v708
        %v710 = vrot.slane %v696, %v709
        %v713 = vunpack.c.l.s4 1983009808
        %v714 = vunpack.c.0.s8 %v713
        %v715 = vlaneseq
        %v716 = vshrl.u32 %v715, 7
        %v717 = vsub.s32 %v714, %v716
        %v718 = vrot.slane %v701, %v717
        %v719 = vcombine.low %v710, %v718
        %v720 = vcombine.high %v710, %v718
        %v722 = vunpack.c.l.s4 1934713408
        %v723 = vunpack.c.0.s8 %v722
        %v724 = vlaneseq
        %v725 = vshrl.u32 %v724, 7
        %v726 = vsub.s32 %v723, %v725
        %v727 = vrot.slane %v719, %v726
        %v729 = vunpack.c.l.s4 1934713408
        %v730 = vunpack.c.0.s8 %v729
        %v731 = vlaneseq
        %v732 = vshrl.u32 %v731, 7
        %v733 = vsub.s32 %v730, %v732
        %v734 = vrot.slane %v720, %v733
        %v735 = vcombine.high %v727, 0
        %v736 = vcombine.high %v734, 0
        %v739 = vunpack.c.l.s4 1983009808
        %v740 = vunpack.c.0.s8 %v739
        %v741 = vlaneseq
        %v742 = vshrl.u32 %v741, 7
        %v743 = vsub.s32 %v740, %v742
        %v744 = vrot.slane %v699, %v743
        %v747 = vunpack.c.l.s4 1983009808
        %v748 = vunpack.c.0.s8 %v747
        %v749 = vlaneseq
        %v750 = vshrl.u32 %v749, 7
        %v751 = vsub.s32 %v748, %v750
        %v752 = vrot.slane %v703, %v751
        %v753 = vcombine.low %v744, %v752
        %v754 = vcombine.high %v744, %v752
        %v756 = vunpack.c.l.s4 1934713408
        %v757 = vunpack.c.0.s8 %v756
        %v758 = vlaneseq
        %v759 = vshrl.u32 %v758, 7
        %v760 = vsub.s32 %v757, %v759
        %v761 = vrot.slane %v753, %v760
        %v763 = vunpack.c.l.s4 1934713408
        %v764 = vunpack.c.0.s8 %v763
        %v765 = vlaneseq
        %v766 = vshrl.u32 %v765, 7
        %v767 = vsub.s32 %v764, %v766
        %v768 = vrot.slane %v754, %v767
        %v769 = vcombine.high %v761, 0
        %v770 = vcombine.high %v768, 0
        %v773 = vpack.i.b16 %v761, %v727
        %v775 = vshrl.u32 %v727, 16
        %v776 = vshrl.u32 %v761, 16
        %v777 = vpack.i.b16 %v776, %v775
        %v781 = vpack.i.b16 %v769, %v735
        %v783 = vshrl.u32 %v735, 16
        %v784 = vshrl.u32 %v769, 16
        %v785 = vpack.i.b16 %v784, %v783
        %v789 = vpack.i.b16 %v768, %v734
        %v791 = vshrl.u32 %v734, 16
        %v792 = vshrl.u32 %v768, 16
        %v793 = vpack.i.b16 %v792, %v791
        %v797 = vpack.i.b16 %v770, %v736
        %v799 = vshrl.u32 %v736, 16
        %v800 = vshrl.u32 %v770, 16
        %v801 = vpack.i.b16 %v800, %v799
        %v803 = vcombine.low %v773, %v789
        %v805 = vunpack.c.l.s4 1983009808
        %v806 = vunpack.c.0.s8 %v805
        %v807 = vlaneseq
        %v808 = vshrl.u32 %v807, 7
        %v809 = vsub.s32 %v806, %v808
        %v810 = vrot.slane %v803, %v809
        %v811 = vcombine.low %v781, %v797
        %v813 = vunpack.c.l.s4 1983009808
        %v814 = vunpack.c.0.s8 %v813
        %v815 = vlaneseq
        %v816 = vshrl.u32 %v815, 7
        %v817 = vsub.s32 %v814, %v816
        %v818 = vrot.slane %v811, %v817
        %v819 = vcombine.low %v810, %v818
        %v821 = vunpack.c.l.s4 1934713408
        %v822 = vunpack.c.0.s8 %v821
        %v823 = vlaneseq
        %v824 = vshrl.u32 %v823, 7
        %v825 = vsub.s32 %v822, %v824
        %v826 = vrot.slane %v819, %v825
        %v827 = vcombine.high %v826, 0
        %v828 = vcombine.low %v777, %v793
        %v830 = vunpack.c.l.s4 1983009808
        %v831 = vunpack.c.0.s8 %v830
        %v832 = vlaneseq
        %v833 = vshrl.u32 %v832, 7
        %v834 = vsub.s32 %v831, %v833
        %v835 = vrot.slane %v828, %v834
        %v836 = vcombine.low %v785, %v801
        %v838 = vunpack.c.l.s4 1983009808
        %v839 = vunpack.c.0.s8 %v838
        %v840 = vlaneseq
        %v841 = vshrl.u32 %v840, 7
        %v842 = vsub.s32 %v839, %v841
        %v843 = vrot.slane %v836, %v842
        %v844 = vcombine.low %v835, %v843
        %v846 = vunpack.c.l.s4 1934713408
        %v847 = vunpack.c.0.s8 %v846
        %v848 = vlaneseq
        %v849 = vshrl.u32 %v848, 7
        %v850 = vsub.s32 %v847, %v849
        %v851 = vrot.slane %v844, %v850
        %v852 = vcombine.high %v851, 0
        %v855 = vpack.i.b16 %v851, %v826
        %v856 = vshrl.u32 %v826, 16
        %v857 = vshrl.u32 %v851, 16
        %v858 = vpack.i.b16 %v857, %v856
        %v861 = vpack.i.b16 %v852, %v827
        %v862 = vshrl.u32 %v827, 16
        %v863 = vshrl.u32 %v852, 16
        %v864 = vpack.i.b16 %v863, %v862
        %v865 = vpack.c.bf16 %v635, %v635
        %867 = vrot.lane.b32.xlu0 %v865, 120
        %v868 = vpop.permute.xlu0 %867
        %869 = vrot.lane.b32.xlu0 %v865, 112
        %v870 = vpop.permute.xlu0 %869
        %871 = vrot.lane.b32.xlu0 %v865, 104
        %v872 = vpop.permute.xlu0 %871
        %v874 = vunpack.c.l.s4 1983009808
        %v875 = vunpack.c.0.s8 %v874
        %v876 = vlaneseq
        %v877 = vshrl.u32 %v876, 7
        %v878 = vsub.s32 %v875, %v877
        %v879 = vrot.slane %v865, %v878
        %v882 = vunpack.c.l.s4 1983009808
        %v883 = vunpack.c.0.s8 %v882
        %v884 = vlaneseq
        %v885 = vshrl.u32 %v884, 7
        %v886 = vsub.s32 %v883, %v885
        %v887 = vrot.slane %v870, %v886
        %v888 = vcombine.low %v879, %v887
        %v889 = vcombine.high %v879, %v887
        %v891 = vunpack.c.l.s4 1934713408
        %v892 = vunpack.c.0.s8 %v891
        %v893 = vlaneseq
        %v894 = vshrl.u32 %v893, 7
        %v895 = vsub.s32 %v892, %v894
        %v896 = vrot.slane %v888, %v895
        %v898 = vunpack.c.l.s4 1934713408
        %v899 = vunpack.c.0.s8 %v898
        %v900 = vlaneseq
        %v901 = vshrl.u32 %v900, 7
        %v902 = vsub.s32 %v899, %v901
        %v903 = vrot.slane %v889, %v902
        %v904 = vcombine.high %v896, 0
        %v905 = vcombine.high %v903, 0
        %v908 = vunpack.c.l.s4 1983009808
        %v909 = vunpack.c.0.s8 %v908
        %v910 = vlaneseq
        %v911 = vshrl.u32 %v910, 7
        %v912 = vsub.s32 %v909, %v911
        %v913 = vrot.slane %v868, %v912
        %v916 = vunpack.c.l.s4 1983009808
        %v917 = vunpack.c.0.s8 %v916
        %v918 = vlaneseq
        %v919 = vshrl.u32 %v918, 7
        %v920 = vsub.s32 %v917, %v919
        %v921 = vrot.slane %v872, %v920
        %v922 = vcombine.low %v913, %v921
        %v923 = vcombine.high %v913, %v921
        %v925 = vunpack.c.l.s4 1934713408
        %v926 = vunpack.c.0.s8 %v925
        %v927 = vlaneseq
        %v928 = vshrl.u32 %v927, 7
        %v929 = vsub.s32 %v926, %v928
        %v930 = vrot.slane %v922, %v929
        %v932 = vunpack.c.l.s4 1934713408
        %v933 = vunpack.c.0.s8 %v932
        %v934 = vlaneseq
        %v935 = vshrl.u32 %v934, 7
        %v936 = vsub.s32 %v933, %v935
        %v937 = vrot.slane %v923, %v936
        %v938 = vcombine.high %v930, 0
        %v939 = vcombine.high %v937, 0
        %v942 = vpack.i.b16 %v930, %v896
        %v944 = vshrl.u32 %v896, 16
        %v945 = vshrl.u32 %v930, 16
        %v946 = vpack.i.b16 %v945, %v944
        %v950 = vpack.i.b16 %v938, %v904
        %v952 = vshrl.u32 %v904, 16
        %v953 = vshrl.u32 %v938, 16
        %v954 = vpack.i.b16 %v953, %v952
        %v958 = vpack.i.b16 %v937, %v903
        %v960 = vshrl.u32 %v903, 16
        %v961 = vshrl.u32 %v937, 16
        %v962 = vpack.i.b16 %v961, %v960
        %v966 = vpack.i.b16 %v939, %v905
        %v968 = vshrl.u32 %v905, 16
        %v969 = vshrl.u32 %v939, 16
        %v970 = vpack.i.b16 %v969, %v968
        %v972 = vcombine.low %v942, %v958
        %v974 = vunpack.c.l.s4 1983009808
        %v975 = vunpack.c.0.s8 %v974
        %v976 = vlaneseq
        %v977 = vshrl.u32 %v976, 7
        %v978 = vsub.s32 %v975, %v977
        %v979 = vrot.slane %v972, %v978
        %v980 = vcombine.low %v950, %v966
        %v982 = vunpack.c.l.s4 1983009808
        %v983 = vunpack.c.0.s8 %v982
        %v984 = vlaneseq
        %v985 = vshrl.u32 %v984, 7
        %v986 = vsub.s32 %v983, %v985
        %v987 = vrot.slane %v980, %v986
        %v988 = vcombine.low %v979, %v987
        %v990 = vunpack.c.l.s4 1934713408
        %v991 = vunpack.c.0.s8 %v990
        %v992 = vlaneseq
        %v993 = vshrl.u32 %v992, 7
        %v994 = vsub.s32 %v991, %v993
        %v995 = vrot.slane %v988, %v994
        %v996 = vcombine.high %v995, 0
        %v997 = vcombine.low %v946, %v962
        %v999 = vunpack.c.l.s4 1983009808
        %v1000 = vunpack.c.0.s8 %v999
        %v1001 = vlaneseq
        %v1002 = vshrl.u32 %v1001, 7
        %v1003 = vsub.s32 %v1000, %v1002
        %v1004 = vrot.slane %v997, %v1003
        %v1005 = vcombine.low %v954, %v970
        %v1007 = vunpack.c.l.s4 1983009808
        %v1008 = vunpack.c.0.s8 %v1007
        %v1009 = vlaneseq
        %v1010 = vshrl.u32 %v1009, 7
        %v1011 = vsub.s32 %v1008, %v1010
        %v1012 = vrot.slane %v1005, %v1011
        %v1013 = vcombine.low %v1004, %v1012
        %v1015 = vunpack.c.l.s4 1934713408
        %v1016 = vunpack.c.0.s8 %v1015
        %v1017 = vlaneseq
        %v1018 = vshrl.u32 %v1017, 7
        %v1019 = vsub.s32 %v1016, %v1018
        %v1020 = vrot.slane %v1013, %v1019
        %v1021 = vcombine.high %v1020, 0
        %v1024 = vpack.i.b16 %v1020, %v995
        %v1025 = vshrl.u32 %v995, 16
        %v1026 = vshrl.u32 %v1020, 16
        %v1027 = vpack.i.b16 %v1026, %v1025
        %v1030 = vpack.i.b16 %v1021, %v996
        %v1031 = vshrl.u32 %v996, 16
        %v1032 = vshrl.u32 %v1021, 16
        %v1033 = vpack.i.b16 %v1032, %v1031
        %v1034 = vpack.c.bf16 %v691, %v691
        %1036 = vrot.lane.b32.xlu0 %v1034, 120
        %v1037 = vpop.permute.xlu0 %1036
        %1038 = vrot.lane.b32.xlu0 %v1034, 112
        %v1039 = vpop.permute.xlu0 %1038
        %1040 = vrot.lane.b32.xlu0 %v1034, 104
        %v1041 = vpop.permute.xlu0 %1040
        %v1043 = vunpack.c.l.s4 1983009808
        %v1044 = vunpack.c.0.s8 %v1043
        %v1045 = vlaneseq
        %v1046 = vshrl.u32 %v1045, 7
        %v1047 = vsub.s32 %v1044, %v1046
        %v1048 = vrot.slane %v1034, %v1047
        %v1051 = vunpack.c.l.s4 1983009808
        %v1052 = vunpack.c.0.s8 %v1051
        %v1053 = vlaneseq
        %v1054 = vshrl.u32 %v1053, 7
        %v1055 = vsub.s32 %v1052, %v1054
        %v1056 = vrot.slane %v1039, %v1055
        %v1057 = vcombine.low %v1048, %v1056
        %v1058 = vcombine.high %v1048, %v1056
        %v1060 = vunpack.c.l.s4 1934713408
        %v1061 = vunpack.c.0.s8 %v1060
        %v1062 = vlaneseq
        %v1063 = vshrl.u32 %v1062, 7
        %v1064 = vsub.s32 %v1061, %v1063
        %v1065 = vrot.slane %v1057, %v1064
        %v1067 = vunpack.c.l.s4 1934713408
        %v1068 = vunpack.c.0.s8 %v1067
        %v1069 = vlaneseq
        %v1070 = vshrl.u32 %v1069, 7
        %v1071 = vsub.s32 %v1068, %v1070
        %v1072 = vrot.slane %v1058, %v1071
        %v1073 = vcombine.high %v1065, 0
        %v1074 = vcombine.high %v1072, 0
        %v1077 = vunpack.c.l.s4 1983009808
        %v1078 = vunpack.c.0.s8 %v1077
        %v1079 = vlaneseq
        %v1080 = vshrl.u32 %v1079, 7
        %v1081 = vsub.s32 %v1078, %v1080
        %v1082 = vrot.slane %v1037, %v1081
        %v1085 = vunpack.c.l.s4 1983009808
        %v1086 = vunpack.c.0.s8 %v1085
        %v1087 = vlaneseq
        %v1088 = vshrl.u32 %v1087, 7
        %v1089 = vsub.s32 %v1086, %v1088
        %v1090 = vrot.slane %v1041, %v1089
        %v1091 = vcombine.low %v1082, %v1090
        %v1092 = vcombine.high %v1082, %v1090
        %v1094 = vunpack.c.l.s4 1934713408
        %v1095 = vunpack.c.0.s8 %v1094
        %v1096 = vlaneseq
        %v1097 = vshrl.u32 %v1096, 7
        %v1098 = vsub.s32 %v1095, %v1097
        %v1099 = vrot.slane %v1091, %v1098
        %v1101 = vunpack.c.l.s4 1934713408
        %v1102 = vunpack.c.0.s8 %v1101
        %v1103 = vlaneseq
        %v1104 = vshrl.u32 %v1103, 7
        %v1105 = vsub.s32 %v1102, %v1104
        %v1106 = vrot.slane %v1092, %v1105
        %v1107 = vcombine.high %v1099, 0
        %v1108 = vcombine.high %v1106, 0
        %v1111 = vpack.i.b16 %v1099, %v1065
        %v1113 = vshrl.u32 %v1065, 16
        %v1114 = vshrl.u32 %v1099, 16
        %v1115 = vpack.i.b16 %v1114, %v1113
        %v1119 = vpack.i.b16 %v1107, %v1073
        %v1121 = vshrl.u32 %v1073, 16
        %v1122 = vshrl.u32 %v1107, 16
        %v1123 = vpack.i.b16 %v1122, %v1121
        %v1127 = vpack.i.b16 %v1106, %v1072
        %v1129 = vshrl.u32 %v1072, 16
        %v1130 = vshrl.u32 %v1106, 16
        %v1131 = vpack.i.b16 %v1130, %v1129
        %v1135 = vpack.i.b16 %v1108, %v1074
        %v1137 = vshrl.u32 %v1074, 16
        %v1138 = vshrl.u32 %v1108, 16
        %v1139 = vpack.i.b16 %v1138, %v1137
        %v1141 = vcombine.low %v1111, %v1127
        %v1143 = vunpack.c.l.s4 1983009808
        %v1144 = vunpack.c.0.s8 %v1143
        %v1145 = vlaneseq
        %v1146 = vshrl.u32 %v1145, 7
        %v1147 = vsub.s32 %v1144, %v1146
        %v1148 = vrot.slane %v1141, %v1147
        %v1149 = vcombine.low %v1119, %v1135
        %v1151 = vunpack.c.l.s4 1983009808
        %v1152 = vunpack.c.0.s8 %v1151
        %v1153 = vlaneseq
        %v1154 = vshrl.u32 %v1153, 7
        %v1155 = vsub.s32 %v1152, %v1154
        %v1156 = vrot.slane %v1149, %v1155
        %v1157 = vcombine.low %v1148, %v1156
        %v1159 = vunpack.c.l.s4 1934713408
        %v1160 = vunpack.c.0.s8 %v1159
        %v1161 = vlaneseq
        %v1162 = vshrl.u32 %v1161, 7
        %v1163 = vsub.s32 %v1160, %v1162
        %v1164 = vrot.slane %v1157, %v1163
        %v1165 = vcombine.high %v1164, 0
        %v1166 = vcombine.low %v1115, %v1131
        %v1168 = vunpack.c.l.s4 1983009808
        %v1169 = vunpack.c.0.s8 %v1168
        %v1170 = vlaneseq
        %v1171 = vshrl.u32 %v1170, 7
        %v1172 = vsub.s32 %v1169, %v1171
        %v1173 = vrot.slane %v1166, %v1172
        %v1174 = vcombine.low %v1123, %v1139
        %v1176 = vunpack.c.l.s4 1983009808
        %v1177 = vunpack.c.0.s8 %v1176
        %v1178 = vlaneseq
        %v1179 = vshrl.u32 %v1178, 7
        %v1180 = vsub.s32 %v1177, %v1179
        %v1181 = vrot.slane %v1174, %v1180
        %v1182 = vcombine.low %v1173, %v1181
        %v1184 = vunpack.c.l.s4 1934713408
        %v1185 = vunpack.c.0.s8 %v1184
        %v1186 = vlaneseq
        %v1187 = vshrl.u32 %v1186, 7
        %v1188 = vsub.s32 %v1185, %v1187
        %v1189 = vrot.slane %v1182, %v1188
        %v1190 = vcombine.high %v1189, 0
        %v1193 = vpack.i.b16 %v1189, %v1164
        %v1194 = vshrl.u32 %v1164, 16
        %v1195 = vshrl.u32 %v1189, 16
        %v1196 = vpack.i.b16 %v1195, %v1194
        %v1199 = vpack.i.b16 %v1190, %v1165
        %v1200 = vshrl.u32 %v1165, 16
        %v1201 = vshrl.u32 %v1190, 16
        %v1202 = vpack.i.b16 %v1201, %v1200
        %vm1203 = vcmask 64512
        %v1205 = vsel %vm1203, %v855, 0
        %v1208 = vsel %vm1203, %v1024, 0
        %1210 = vmatprep.subr.bf16.mxu0 0
        %1211 = vmatpush1.bf16.xpose.msra.mxu0 0
        %1212 = vmatprep.subr.bf16.mxu0 0
        %1213 = vmatpush1.bf16.xpose.msra.mxu0 0
        %1214 = vmatprep.subr.bf16.mxu0 0
        %1215 = vmatpush1.bf16.xpose.msra.mxu0 0
        %1216 = vmatprep.subr.bf16.mxu0 0
        %1217 = vmatpush1.bf16.xpose.msra.mxu0 0
        %1218 = vmatprep.subr.bf16.mxu0 0
        %1219 = vmatpush1.bf16.xpose.msra.mxu0 0
        %1220 = vmatprep.subr.bf16.mxu0 0
        %1221 = vmatpush1.bf16.xpose.msra.mxu0 0
        %1222 = vmatprep.subr.bf16.mxu0 0
        %1223 = vmatpush1.bf16.xpose.msra.mxu0 0
        %1224 = vmatprep.subr.bf16.mxu0 0
        %1225 = vmatpush1.bf16.xpose.msra.mxu0 %v1208
        %1226 = vmatprep.subr.bf16.mxu0 0
        %1227 = vmatpush2.bf16.xpose.msra.mxu0 0
        %1228 = vmatprep.subr.bf16.mxu0 0
        %1229 = vmatpush2.bf16.xpose.msra.mxu0 0
        %1230 = vmatprep.subr.bf16.mxu0 0
        %1231 = vmatpush2.bf16.xpose.msra.mxu0 0
        %1232 = vmatprep.subr.bf16.mxu0 0
        %1233 = vmatpush2.bf16.xpose.msra.mxu0 0
        %1234 = vmatprep.subr.bf16.mxu0 0
        %1235 = vmatpush2.bf16.xpose.msra.mxu0 0
        %1236 = vmatprep.subr.bf16.mxu0 0
        %1237 = vmatpush2.bf16.xpose.msra.mxu0 0
        %1238 = vmatprep.subr.bf16.mxu0 0
        %1239 = vmatpush2.bf16.xpose.msra.mxu0 0
        %1240 = vmatprep.subr.bf16.mxu0 0
        %1241 = vmatpush2.bf16.xpose.msra.mxu0 0
        %1242 = vmatprep.mubr.bf16.mxu0 0
        %1243 = vmatmul.mubr.bf16.gmra.mxu0 %v1205
        %v1244 = vpop.f32.mrf.mxu0
        %v1245 = vadd.f32 0.0, %v1244
        %v1246 = vpop.f32.mrf.mxu0
        %v1247 = vpop.f32.mrf.mxu0
        %v1248 = vpop.f32.mrf.mxu0
        %1249 = vdwg.mxu0
        %v1251 = vsel %vm1203, %v858, 0
        %v1254 = vsel %vm1203, %v1027, 0
        %1256 = vmatprep.subr.bf16.mxu0 0
        %1257 = vmatpush1.bf16.xpose.msra.mxu0 0
        %1258 = vmatprep.subr.bf16.mxu0 0
        %1259 = vmatpush1.bf16.xpose.msra.mxu0 0
        %1260 = vmatprep.subr.bf16.mxu0 0
        %1261 = vmatpush1.bf16.xpose.msra.mxu0 0
        %1262 = vmatprep.subr.bf16.mxu0 0
        %1263 = vmatpush1.bf16.xpose.msra.mxu0 0
        %1264 = vmatprep.subr.bf16.mxu0 0
        %1265 = vmatpush1.bf16.xpose.msra.mxu0 0
        %1266 = vmatprep.subr.bf16.mxu0 0
        %1267 = vmatpush1.bf16.xpose.msra.mxu0 0
        %1268 = vmatprep.subr.bf16.mxu0 0
        %1269 = vmatpush1.bf16.xpose.msra.mxu0 0
        %1270 = vmatprep.subr.bf16.mxu0 0
        %1271 = vmatpush1.bf16.xpose.msra.mxu0 %v1254
        %1272 = vmatprep.subr.bf16.mxu0 0
        %1273 = vmatpush2.bf16.xpose.msra.mxu0 0
        %1274 = vmatprep.subr.bf16.mxu0 0
        %1275 = vmatpush2.bf16.xpose.msra.mxu0 0
        %1276 = vmatprep.subr.bf16.mxu0 0
        %1277 = vmatpush2.bf16.xpose.msra.mxu0 0
        %1278 = vmatprep.subr.bf16.mxu0 0
        %1279 = vmatpush2.bf16.xpose.msra.mxu0 0
        %1280 = vmatprep.subr.bf16.mxu0 0
        %1281 = vmatpush2.bf16.xpose.msra.mxu0 0
        %1282 = vmatprep.subr.bf16.mxu0 0
        %1283 = vmatpush2.bf16.xpose.msra.mxu0 0
        %1284 = vmatprep.subr.bf16.mxu0 0
        %1285 = vmatpush2.bf16.xpose.msra.mxu0 0
        %1286 = vmatprep.subr.bf16.mxu0 0
        %1287 = vmatpush2.bf16.xpose.msra.mxu0 0
        %1288 = vmatprep.mubr.bf16.mxu0 0
        %1289 = vmatmul.mubr.bf16.gmra.mxu0 %v1251
        %v1290 = vpop.f32.mrf.mxu0
        %v1291 = vadd.f32 0.0, %v1290
        %v1292 = vpop.f32.mrf.mxu0
        %v1293 = vpop.f32.mrf.mxu0
        %v1294 = vpop.f32.mrf.mxu0
        %1295 = vdwg.mxu0
        %v1297 = vsel %vm1203, %v861, 0
        %v1300 = vsel %vm1203, %v1030, 0
        %1302 = vmatprep.subr.bf16.mxu0 0
        %1303 = vmatpush1.bf16.xpose.msra.mxu0 0
        %1304 = vmatprep.subr.bf16.mxu0 0
        %1305 = vmatpush1.bf16.xpose.msra.mxu0 0
        %1306 = vmatprep.subr.bf16.mxu0 0
        %1307 = vmatpush1.bf16.xpose.msra.mxu0 0
        %1308 = vmatprep.subr.bf16.mxu0 0
        %1309 = vmatpush1.bf16.xpose.msra.mxu0 0
        %1310 = vmatprep.subr.bf16.mxu0 0
        %1311 = vmatpush1.bf16.xpose.msra.mxu0 0
        %1312 = vmatprep.subr.bf16.mxu0 0
        %1313 = vmatpush1.bf16.xpose.msra.mxu0 0
        %1314 = vmatprep.subr.bf16.mxu0 0
        %1315 = vmatpush1.bf16.xpose.msra.mxu0 0
        %1316 = vmatprep.subr.bf16.mxu0 0
        %1317 = vmatpush1.bf16.xpose.msra.mxu0 %v1300
        %1318 = vmatprep.subr.bf16.mxu0 0
        %1319 = vmatpush2.bf16.xpose.msra.mxu0 0
        %1320 = vmatprep.subr.bf16.mxu0 0
        %1321 = vmatpush2.bf16.xpose.msra.mxu0 0
        %1322 = vmatprep.subr.bf16.mxu0 0
        %1323 = vmatpush2.bf16.xpose.msra.mxu0 0
        %1324 = vmatprep.subr.bf16.mxu0 0
        %1325 = vmatpush2.bf16.xpose.msra.mxu0 0
        %1326 = vmatprep.subr.bf16.mxu0 0
        %1327 = vmatpush2.bf16.xpose.msra.mxu0 0
        %1328 = vmatprep.subr.bf16.mxu0 0
        %1329 = vmatpush2.bf16.xpose.msra.mxu0 0
        %1330 = vmatprep.subr.bf16.mxu0 0
        %1331 = vmatpush2.bf16.xpose.msra.mxu0 0
        %1332 = vmatprep.subr.bf16.mxu0 0
        %1333 = vmatpush2.bf16.xpose.msra.mxu0 0
        %1334 = vmatprep.mubr.bf16.mxu0 0
        %1335 = vmatmul.mubr.bf16.gmra.mxu0 %v1297
        %v1336 = vpop.f32.mrf.mxu0
        %v1337 = vadd.f32 0.0, %v1336
        %v1338 = vpop.f32.mrf.mxu0
        %v1339 = vpop.f32.mrf.mxu0
        %v1340 = vpop.f32.mrf.mxu0
        %1341 = vdwg.mxu0
        %v1343 = vsel %vm1203, %v864, 0
        %v1346 = vsel %vm1203, %v1033, 0
        %1348 = vmatprep.subr.bf16.mxu0 0
        %1349 = vmatpush1.bf16.xpose.msra.mxu0 0
        %1350 = vmatprep.subr.bf16.mxu0 0
        %1351 = vmatpush1.bf16.xpose.msra.mxu0 0
        %1352 = vmatprep.subr.bf16.mxu0 0
        %1353 = vmatpush1.bf16.xpose.msra.mxu0 0
        %1354 = vmatprep.subr.bf16.mxu0 0
        %1355 = vmatpush1.bf16.xpose.msra.mxu0 0
        %1356 = vmatprep.subr.bf16.mxu0 0
        %1357 = vmatpush1.bf16.xpose.msra.mxu0 0
        %1358 = vmatprep.subr.bf16.mxu0 0
        %1359 = vmatpush1.bf16.xpose.msra.mxu0 0
        %1360 = vmatprep.subr.bf16.mxu0 0
        %1361 = vmatpush1.bf16.xpose.msra.mxu0 0
        %1362 = vmatprep.subr.bf16.mxu0 0
        %1363 = vmatpush1.bf16.xpose.msra.mxu0 %v1346
        %1364 = vmatprep.subr.bf16.mxu0 0
        %1365 = vmatpush2.bf16.xpose.msra.mxu0 0
        %1366 = vmatprep.subr.bf16.mxu0 0
        %1367 = vmatpush2.bf16.xpose.msra.mxu0 0
        %1368 = vmatprep.subr.bf16.mxu0 0
        %1369 = vmatpush2.bf16.xpose.msra.mxu0 0
        %1370 = vmatprep.subr.bf16.mxu0 0
        %1371 = vmatpush2.bf16.xpose.msra.mxu0 0
        %1372 = vmatprep.subr.bf16.mxu0 0
        %1373 = vmatpush2.bf16.xpose.msra.mxu0 0
        %1374 = vmatprep.subr.bf16.mxu0 0
        %1375 = vmatpush2.bf16.xpose.msra.mxu0 0
        %1376 = vmatprep.subr.bf16.mxu0 0
        %1377 = vmatpush2.bf16.xpose.msra.mxu0 0
        %1378 = vmatprep.subr.bf16.mxu0 0
        %1379 = vmatpush2.bf16.xpose.msra.mxu0 0
        %1380 = vmatprep.mubr.bf16.mxu0 0
        %1381 = vmatmul.mubr.bf16.gmra.mxu0 %v1343
        %v1382 = vpop.f32.mrf.mxu0
        %v1383 = vadd.f32 0.0, %v1382
        %v1384 = vpop.f32.mrf.mxu0
        %v1385 = vpop.f32.mrf.mxu0
        %v1386 = vpop.f32.mrf.mxu0
        %1387 = vdwg.mxu0
        %v1388 = vsel %vm1203, %v1245, -inf
        %1389 = vmax.xlane.f32.xlu0 %v1388
        %v1390 = vpop.xlane.xlu0 %1389
        %v1391 = vsel %vm1203, %v1291, -inf
        %1392 = vmax.xlane.f32.xlu0 %v1391
        %v1393 = vpop.xlane.xlu0 %1392
        %v1394 = vsel %vm1203, %v1337, -inf
        %1395 = vmax.xlane.f32.xlu0 %v1394
        %v1396 = vpop.xlane.xlu0 %1395
        %v1397 = vsel %vm1203, %v1383, -inf
        %1398 = vmax.xlane.f32.xlu0 %v1397
        %v1399 = vpop.xlane.xlu0 %1398
        %v1400 = vsub.f32 %v1245, %v1390
        %v1401 = vsub.f32 %v1291, %v1393
        %v1402 = vsub.f32 %v1337, %v1396
        %v1403 = vsub.f32 %v1383, %v1399
        %v1404 = vmul.f32 %v1400, 1.442695
        %v1405 = vpow.pop %v1404
        %v1406 = vmul.f32 %v1401, 1.442695
        %v1407 = vpow.pop %v1406
        %v1408 = vmul.f32 %v1402, 1.442695
        %v1409 = vpow.pop %v1408
        %v1410 = vmul.f32 %v1403, 1.442695
        %v1411 = vpow.pop %v1410
        %v1412 = vsel %vm1203, %v1405, 0.0
        %1413 = vadd.xlane.f32.xlu0 %v1412
        %v1414 = vpop.xlane.xlu0 %1413
        %v1415 = vsel %vm1203, %v1407, 0.0
        %1416 = vadd.xlane.f32.xlu0 %v1415
        %v1417 = vpop.xlane.xlu0 %1416
        %v1418 = vsel %vm1203, %v1409, 0.0
        %1419 = vadd.xlane.f32.xlu0 %v1418
        %v1420 = vpop.xlane.xlu0 %1419
        %v1421 = vsel %vm1203, %v1411, 0.0
        %1422 = vadd.xlane.f32.xlu0 %v1421
        %v1423 = vpop.xlane.xlu0 %1422
        %v1424 = vrcp.pop %v1414
        %v1425 = vrcp.pop %v1417
        %v1426 = vrcp.pop %v1420
        %v1427 = vrcp.pop %v1423
        %v1428 = vmul.f32 %v1405, %v1424
        %v1429 = vmul.f32 %v1407, %v1425
        %v1430 = vmul.f32 %v1409, %v1426
        %v1431 = vmul.f32 %v1411, %v1427
        %v1432 = vpack.c.bf16 %v1428, %v1428
        %v1433 = vpack.c.bf16 %v1429, %v1429
        %v1434 = vpack.c.bf16 %v1430, %v1430
        %v1435 = vpack.c.bf16 %v1431, %v1431
        %v1437 = vsel %vm1203, %v1432, 0
        %vm1439 = vcmask 1043456
        %v1441 = vsel %vm1439, %v1193, 0
        %1443 = vmatprep.subr.bf16.mxu0 0
        %1444 = vmatpush1.bf16.msra.mxu0 0
        %1445 = vmatprep.subr.bf16.mxu0 0
        %1446 = vmatpush1.bf16.msra.mxu0 0
        %1447 = vmatprep.subr.bf16.mxu0 0
        %1448 = vmatpush1.bf16.msra.mxu0 0
        %1449 = vmatprep.subr.bf16.mxu0 0
        %1450 = vmatpush1.bf16.msra.mxu0 0
        %1451 = vmatprep.subr.bf16.mxu0 0
        %1452 = vmatpush1.bf16.msra.mxu0 0
        %1453 = vmatprep.subr.bf16.mxu0 0
        %1454 = vmatpush1.bf16.msra.mxu0 0
        %1455 = vmatprep.subr.bf16.mxu0 0
        %1456 = vmatpush1.bf16.msra.mxu0 0
        %1457 = vmatprep.subr.bf16.mxu0 0
        %1458 = vmatpush1.bf16.msra.mxu0 %v1441
        %1459 = vmatprep.subr.bf16.mxu0 0
        %1460 = vmatpush2.bf16.msra.mxu0 0
        %1461 = vmatprep.subr.bf16.mxu0 0
        %1462 = vmatpush2.bf16.msra.mxu0 0
        %1463 = vmatprep.subr.bf16.mxu0 0
        %1464 = vmatpush2.bf16.msra.mxu0 0
        %1465 = vmatprep.subr.bf16.mxu0 0
        %1466 = vmatpush2.bf16.msra.mxu0 0
        %1467 = vmatprep.subr.bf16.mxu0 0
        %1468 = vmatpush2.bf16.msra.mxu0 0
        %1469 = vmatprep.subr.bf16.mxu0 0
        %1470 = vmatpush2.bf16.msra.mxu0 0
        %1471 = vmatprep.subr.bf16.mxu0 0
        %1472 = vmatpush2.bf16.msra.mxu0 0
        %1473 = vmatprep.subr.bf16.mxu0 0
        %1474 = vmatpush2.bf16.msra.mxu0 0
        %1475 = vmatprep.mubr.bf16.mxu0 0
        %1476 = vmatmul.mubr.bf16.gmra.mxu0 %v1437
        %v1477 = vpop.f32.mrf.mxu0
        %v1478 = vadd.f32 0.0, %v1477
        %v1479 = vpop.f32.mrf.mxu0
        %v1480 = vpop.f32.mrf.mxu0
        %v1481 = vpop.f32.mrf.mxu0
        %1482 = vdwg.mxu0
        %v1484 = vsel %vm1203, %v1433, 0
        %v1487 = vsel %vm1439, %v1196, 0
        %1489 = vmatprep.subr.bf16.mxu0 0
        %1490 = vmatpush1.bf16.msra.mxu0 0
        %1491 = vmatprep.subr.bf16.mxu0 0
        %1492 = vmatpush1.bf16.msra.mxu0 0
        %1493 = vmatprep.subr.bf16.mxu0 0
        %1494 = vmatpush1.bf16.msra.mxu0 0
        %1495 = vmatprep.subr.bf16.mxu0 0
        %1496 = vmatpush1.bf16.msra.mxu0 0
        %1497 = vmatprep.subr.bf16.mxu0 0
        %1498 = vmatpush1.bf16.msra.mxu0 0
        %1499 = vmatprep.subr.bf16.mxu0 0
        %1500 = vmatpush1.bf16.msra.mxu0 0
        %1501 = vmatprep.subr.bf16.mxu0 0
        %1502 = vmatpush1.bf16.msra.mxu0 0
        %1503 = vmatprep.subr.bf16.mxu0 0
        %1504 = vmatpush1.bf16.msra.mxu0 %v1487
        %1505 = vmatprep.subr.bf16.mxu0 0
        %1506 = vmatpush2.bf16.msra.mxu0 0
        %1507 = vmatprep.subr.bf16.mxu0 0
        %1508 = vmatpush2.bf16.msra.mxu0 0
        %1509 = vmatprep.subr.bf16.mxu0 0
        %1510 = vmatpush2.bf16.msra.mxu0 0
        %1511 = vmatprep.subr.bf16.mxu0 0
        %1512 = vmatpush2.bf16.msra.mxu0 0
        %1513 = vmatprep.subr.bf16.mxu0 0
        %1514 = vmatpush2.bf16.msra.mxu0 0
        %1515 = vmatprep.subr.bf16.mxu0 0
        %1516 = vmatpush2.bf16.msra.mxu0 0
        %1517 = vmatprep.subr.bf16.mxu0 0
        %1518 = vmatpush2.bf16.msra.mxu0 0
        %1519 = vmatprep.subr.bf16.mxu0 0
        %1520 = vmatpush2.bf16.msra.mxu0 0
        %1521 = vmatprep.mubr.bf16.mxu0 0
        %1522 = vmatmul.mubr.bf16.gmra.mxu0 %v1484
        %v1523 = vpop.f32.mrf.mxu0
        %v1524 = vadd.f32 0.0, %v1523
        %v1525 = vpop.f32.mrf.mxu0
        %v1526 = vpop.f32.mrf.mxu0
        %v1527 = vpop.f32.mrf.mxu0
        %1528 = vdwg.mxu0
        %v1530 = vsel %vm1203, %v1434, 0
        %v1533 = vsel %vm1439, %v1199, 0
        %1535 = vmatprep.subr.bf16.mxu0 0
        %1536 = vmatpush1.bf16.msra.mxu0 0
        %1537 = vmatprep.subr.bf16.mxu0 0
        %1538 = vmatpush1.bf16.msra.mxu0 0
        %1539 = vmatprep.subr.bf16.mxu0 0
        %1540 = vmatpush1.bf16.msra.mxu0 0
        %1541 = vmatprep.subr.bf16.mxu0 0
        %1542 = vmatpush1.bf16.msra.mxu0 0
        %1543 = vmatprep.subr.bf16.mxu0 0
        %1544 = vmatpush1.bf16.msra.mxu0 0
        %1545 = vmatprep.subr.bf16.mxu0 0
        %1546 = vmatpush1.bf16.msra.mxu0 0
        %1547 = vmatprep.subr.bf16.mxu0 0
        %1548 = vmatpush1.bf16.msra.mxu0 0
        %1549 = vmatprep.subr.bf16.mxu0 0
        %1550 = vmatpush1.bf16.msra.mxu0 %v1533
        %1551 = vmatprep.subr.bf16.mxu0 0
        %1552 = vmatpush2.bf16.msra.mxu0 0
        %1553 = vmatprep.subr.bf16.mxu0 0
        %1554 = vmatpush2.bf16.msra.mxu0 0
        %1555 = vmatprep.subr.bf16.mxu0 0
        %1556 = vmatpush2.bf16.msra.mxu0 0
        %1557 = vmatprep.subr.bf16.mxu0 0
        %1558 = vmatpush2.bf16.msra.mxu0 0
        %1559 = vmatprep.subr.bf16.mxu0 0
        %1560 = vmatpush2.bf16.msra.mxu0 0
        %1561 = vmatprep.subr.bf16.mxu0 0
        %1562 = vmatpush2.bf16.msra.mxu0 0
        %1563 = vmatprep.subr.bf16.mxu0 0
        %1564 = vmatpush2.bf16.msra.mxu0 0
        %1565 = vmatprep.subr.bf16.mxu0 0
        %1566 = vmatpush2.bf16.msra.mxu0 0
        %1567 = vmatprep.mubr.bf16.mxu0 0
        %1568 = vmatmul.mubr.bf16.gmra.mxu0 %v1530
        %v1569 = vpop.f32.mrf.mxu0
        %v1570 = vadd.f32 0.0, %v1569
        %v1571 = vpop.f32.mrf.mxu0
        %v1572 = vpop.f32.mrf.mxu0
        %v1573 = vpop.f32.mrf.mxu0
        %1574 = vdwg.mxu0
        %v1576 = vsel %vm1203, %v1435, 0
        %v1579 = vsel %vm1439, %v1202, 0
        %1581 = vmatprep.subr.bf16.mxu0 0
        %1582 = vmatpush1.bf16.msra.mxu0 0
        %1583 = vmatprep.subr.bf16.mxu0 0
        %1584 = vmatpush1.bf16.msra.mxu0 0
        %1585 = vmatprep.subr.bf16.mxu0 0
        %1586 = vmatpush1.bf16.msra.mxu0 0
        %1587 = vmatprep.subr.bf16.mxu0 0
        %1588 = vmatpush1.bf16.msra.mxu0 0
        %1589 = vmatprep.subr.bf16.mxu0 0
        %1590 = vmatpush1.bf16.msra.mxu0 0
        %1591 = vmatprep.subr.bf16.mxu0 0
        %1592 = vmatpush1.bf16.msra.mxu0 0
        %1593 = vmatprep.subr.bf16.mxu0 0
        %1594 = vmatpush1.bf16.msra.mxu0 0
        %1595 = vmatprep.subr.bf16.mxu0 0
        %1596 = vmatpush1.bf16.msra.mxu0 %v1579
        %1597 = vmatprep.subr.bf16.mxu0 0
        %1598 = vmatpush2.bf16.msra.mxu0 0
        %1599 = vmatprep.subr.bf16.mxu0 0
        %1600 = vmatpush2.bf16.msra.mxu0 0
        %1601 = vmatprep.subr.bf16.mxu0 0
        %1602 = vmatpush2.bf16.msra.mxu0 0
        %1603 = vmatprep.subr.bf16.mxu0 0
        %1604 = vmatpush2.bf16.msra.mxu0 0
        %1605 = vmatprep.subr.bf16.mxu0 0
        %1606 = vmatpush2.bf16.msra.mxu0 0
        %1607 = vmatprep.subr.bf16.mxu0 0
        %1608 = vmatpush2.bf16.msra.mxu0 0
        %1609 = vmatprep.subr.bf16.mxu0 0
        %1610 = vmatpush2.bf16.msra.mxu0 0
        %1611 = vmatprep.subr.bf16.mxu0 0
        %1612 = vmatpush2.bf16.msra.mxu0 0
        %1613 = vmatprep.mubr.bf16.mxu0 0
        %1614 = vmatmul.mubr.bf16.gmra.mxu0 %v1576
        %v1615 = vpop.f32.mrf.mxu0
        %v1616 = vadd.f32 0.0, %v1615
        %v1617 = vpop.f32.mrf.mxu0
        %v1618 = vpop.f32.mrf.mxu0
        %v1619 = vpop.f32.mrf.mxu0
        %1620 = vdwg.mxu0
        %v1621 = vcombine.low %v1478, %v1570
        %v1622 = vcombine.high %v1478, %v1570
        %v1624 = vunpack.c.l.s4 1983009808
        %v1625 = vunpack.c.0.s8 %v1624
        %v1626 = vlaneseq
        %v1627 = vshrl.u32 %v1626, 7
        %v1628 = vsub.s32 %v1625, %v1627
        %v1629 = vrot.slane %v1621, %v1628
        %v1631 = vunpack.c.l.s4 1983009808
        %v1632 = vunpack.c.0.s8 %v1631
        %v1633 = vlaneseq
        %v1634 = vshrl.u32 %v1633, 7
        %v1635 = vsub.s32 %v1632, %v1634
        %v1636 = vrot.slane %v1622, %v1635
        %v1637 = vcombine.low %v1524, %v1616
        %v1638 = vcombine.high %v1524, %v1616
        %v1640 = vunpack.c.l.s4 1983009808
        %v1641 = vunpack.c.0.s8 %v1640
        %v1642 = vlaneseq
        %v1643 = vshrl.u32 %v1642, 7
        %v1644 = vsub.s32 %v1641, %v1643
        %v1645 = vrot.slane %v1637, %v1644
        %v1647 = vunpack.c.l.s4 1983009808
        %v1648 = vunpack.c.0.s8 %v1647
        %v1649 = vlaneseq
        %v1650 = vshrl.u32 %v1649, 7
        %v1651 = vsub.s32 %v1648, %v1650
        %v1652 = vrot.slane %v1638, %v1651
        %v1653 = vcombine.low %v1629, %v1645
        %v1654 = vcombine.high %v1629, %v1645
        %v1656 = vunpack.c.l.s4 1934713408
        %v1657 = vunpack.c.0.s8 %v1656
        %v1658 = vlaneseq
        %v1659 = vshrl.u32 %v1658, 7
        %v1660 = vsub.s32 %v1657, %v1659
        %v1661 = vrot.slane %v1653, %v1660
        %v1663 = vunpack.c.l.s4 1934713408
        %v1664 = vunpack.c.0.s8 %v1663
        %v1665 = vlaneseq
        %v1666 = vshrl.u32 %v1665, 7
        %v1667 = vsub.s32 %v1664, %v1666
        %v1668 = vrot.slane %v1654, %v1667
        %v1669 = vcombine.low %v1636, %v1652
        %v1670 = vcombine.high %v1636, %v1652
        %v1672 = vunpack.c.l.s4 1934713408
        %v1673 = vunpack.c.0.s8 %v1672
        %v1674 = vlaneseq
        %v1675 = vshrl.u32 %v1674, 7
        %v1676 = vsub.s32 %v1673, %v1675
        %v1677 = vrot.slane %v1669, %v1676
        %v1679 = vunpack.c.l.s4 1934713408
        %v1680 = vunpack.c.0.s8 %v1679
        %v1681 = vlaneseq
        %v1682 = vshrl.u32 %v1681, 7
        %v1683 = vsub.s32 %v1680, %v1682
        %v1684 = vrot.slane %v1670, %v1683
        %v1685 = vcombine.high %v1661, 0.0
        %v1686 = vcombine.high %v1668, 0.0
        %v1687 = vcombine.high %v1677, 0.0
        %v1688 = vcombine.high %v1684, 0.0
        %v1689 = vcombine.low %v1661, %v1668
        %v1691 = vunpack.c.l.s4 1983009808
        %v1692 = vunpack.c.0.s8 %v1691
        %v1693 = vlaneseq
        %v1694 = vshrl.u32 %v1693, 7
        %v1695 = vsub.s32 %v1692, %v1694
        %v1696 = vrot.slane %v1689, %v1695
        %v1697 = vcombine.low %v1685, %v1686
        %v1699 = vunpack.c.l.s4 1983009808
        %v1700 = vunpack.c.0.s8 %v1699
        %v1701 = vlaneseq
        %v1702 = vshrl.u32 %v1701, 7
        %v1703 = vsub.s32 %v1700, %v1702
        %v1704 = vrot.slane %v1697, %v1703
        %v1705 = vcombine.low %v1677, %v1684
        %v1707 = vunpack.c.l.s4 1983009808
        %v1708 = vunpack.c.0.s8 %v1707
        %v1709 = vlaneseq
        %v1710 = vshrl.u32 %v1709, 7
        %v1711 = vsub.s32 %v1708, %v1710
        %v1712 = vrot.slane %v1705, %v1711
        %v1713 = vcombine.low %v1687, %v1688
        %v1715 = vunpack.c.l.s4 1983009808
        %v1716 = vunpack.c.0.s8 %v1715
        %v1717 = vlaneseq
        %v1718 = vshrl.u32 %v1717, 7
        %v1719 = vsub.s32 %v1716, %v1718
        %v1720 = vrot.slane %v1713, %v1719
        %v1721 = vcombine.low %v1696, %v1704
        %v1722 = vcombine.high %v1696, %v1704
        %v1724 = vunpack.c.l.s4 1934713408
        %v1725 = vunpack.c.0.s8 %v1724
        %v1726 = vlaneseq
        %v1727 = vshrl.u32 %v1726, 7
        %v1728 = vsub.s32 %v1725, %v1727
        %v1729 = vrot.slane %v1721, %v1728
        %v1731 = vunpack.c.l.s4 1934713408
        %v1732 = vunpack.c.0.s8 %v1731
        %v1733 = vlaneseq
        %v1734 = vshrl.u32 %v1733, 7
        %v1735 = vsub.s32 %v1732, %v1734
        %v1736 = vrot.slane %v1722, %v1735
        %v1737 = vcombine.low %v1712, %v1720
        %v1738 = vcombine.high %v1712, %v1720
        %v1740 = vunpack.c.l.s4 1934713408
        %v1741 = vunpack.c.0.s8 %v1740
        %v1742 = vlaneseq
        %v1743 = vshrl.u32 %v1742, 7
        %v1744 = vsub.s32 %v1741, %v1743
        %v1745 = vrot.slane %v1737, %v1744
        %v1747 = vunpack.c.l.s4 1934713408
        %v1748 = vunpack.c.0.s8 %v1747
        %v1749 = vlaneseq
        %v1750 = vshrl.u32 %v1749, 7
        %v1751 = vsub.s32 %v1748, %v1750
        %v1752 = vrot.slane %v1738, %v1751
        %v1753 = vcombine.low %v1729, %v1745
        %v1754 = vcombine.high %v1729, %v1745
        %v1755 = vcombine.low %v1736, %v1752
        %v1756 = vcombine.high %v1736, %v1752
        %1758 = vrot.lane.b32.xlu0 %v1754, 8
        %v1759 = vpop.permute.xlu0 %1758
        %1762 = vrot.lane.b32.xlu0 %v1755, 16
        %v1763 = vpop.permute.xlu0 %1762
        %1766 = vrot.lane.b32.xlu0 %v1756, 24
        %v1767 = vpop.permute.xlu0 %1766
        %v1769 = vsel %vm1203, %v1753, %v1759
        %vm1770 = vcmask 130048
        %v1771 = vsel %vm1770, %v1769, %v1763
        %vm1772 = vcmask 195584
        %v1773 = vsel %vm1772, %v1771, %v1767
        %v1774 = vpack.c.bf16 %v1773, %v1773
        %v1775 = vld [vmem:[%s6] sm:$0xf]
        %v1776 = vld [vmem:[%s6 + $0x4] sm:$0xf]
        %v1777 = vld [vmem:[%s6 + $0x8] sm:$0xf]
        %v1778 = vld [vmem:[%s6 + $0xc] sm:$0xf]
        %v1779 = vld [vmem:[%s7] sm:$0x1]
        %v1781 = vlaneseq
        %v1782 = vshrl.u32 %v1781, 7
        %v1783 = vsub.s32 0, %v1782
        %v1784 = vrot.slane %v1779, %v1783
        %v1790 = vunpack.c.l.b16 %v1775
        %v1791 = vunpack.c.l.b16 %v1776
        %v1792 = vunpack.c.l.b16 %v1777
        %v1793 = vunpack.c.l.b16 %v1778
        %v1794 = vpack.c.b16 %v1791, %v1790
        %v1795 = vpack.c.b16 %v1793, %v1792
        %v1799 = vsel %vm495, %v1774, 0
        %1801 = vmatprep.subr.bf16.mxu0 0
        %1802 = vmatpush1.bf16.msra.mxu0 0
        %1803 = vmatprep.subr.bf16.mxu0 0
        %1804 = vmatpush1.bf16.msra.mxu0 0
        %1805 = vmatprep.subr.bf16.mxu0 0
        %1806 = vmatpush1.bf16.msra.mxu0 0
        %1807 = vmatprep.subr.bf16.mxu0 0
        %1808 = vmatpush1.bf16.msra.mxu0 0
        %1809 = vmatprep.subr.bf16.mxu0 0
        %1810 = vmatpush1.bf16.msra.mxu0 0
        %1811 = vmatprep.subr.bf16.mxu0 0
        %1812 = vmatpush1.bf16.msra.mxu0 0
        %1813 = vmatprep.subr.bf16.mxu0 0
        %1814 = vmatpush1.bf16.msra.mxu0 %v1795
        %1815 = vmatprep.subr.bf16.mxu0 0
        %1816 = vmatpush1.bf16.msra.mxu0 %v1794
        %1817 = vmatprep.subr.bf16.mxu0 0
        %1818 = vmatpush2.bf16.msra.mxu0 0
        %1819 = vmatprep.subr.bf16.mxu0 0
        %1820 = vmatpush2.bf16.msra.mxu0 0
        %1821 = vmatprep.subr.bf16.mxu0 0
        %1822 = vmatpush2.bf16.msra.mxu0 0
        %1823 = vmatprep.subr.bf16.mxu0 0
        %1824 = vmatpush2.bf16.msra.mxu0 0
        %1825 = vmatprep.subr.bf16.mxu0 0
        %1826 = vmatpush2.bf16.msra.mxu0 0
        %1827 = vmatprep.subr.bf16.mxu0 0
        %1828 = vmatpush2.bf16.msra.mxu0 0
        %1829 = vmatprep.subr.bf16.mxu0 0
        %1830 = vmatpush2.bf16.msra.mxu0 0
        %1831 = vmatprep.subr.bf16.mxu0 0
        %1832 = vmatpush2.bf16.msra.mxu0 0
        %1833 = vmatprep.mubr.bf16.mxu0 0
        %1834 = vmatmul.mubr.bf16.gmra.mxu0 %v1799
        %v1835 = vpop.f32.mrf.mxu0
        %v1836 = vadd.f32 %v1784, %v1835
        %v1837 = vpop.f32.mrf.mxu0
        %v1838 = vpop.f32.mrf.mxu0
        %v1839 = vpop.f32.mrf.mxu0
        %1840 = vdwg.mxu0
        %v1841 = vadd.f32 %v492, %v1836
        %v1842 = vld [vmem:[%s8] sm:$0x1]
        %v1843 = vld [vmem:[%s9] sm:$0x1]
        %v1844 = vsel %vm495, %v1841, 0.0
        %1845 = vadd.xlane.f32.xlu0 %v1844
        %v1846 = vpop.xlane.xlu0 %1845
        %v1847 = vmul.f32 %v1846, %v499
        %v1848 = vsub.f32 %v1841, %v1847
        %v1849 = vmul.f32 %v1848, %v1848
        %v1850 = vsel %vm495, %v1849, 0.0
        %1851 = vadd.xlane.f32.xlu0 %v1850
        %v1852 = vpop.xlane.xlu0 %1851
        %v1853 = vmul.f32 %v1852, %v499
        %v1854 = vadd.f32 %v1853, 1e-05
        %v1855 = vrsqrt.pop %v1854
        %v1856 = vmul.f32 %v1848, %v1855
        %v1858 = vlaneseq
        %v1859 = vshrl.u32 %v1858, 7
        %v1860 = vsub.s32 0, %v1859
        %v1861 = vrot.slane %v1842, %v1860
        %v1863 = vmul.f32 %v1856, %v1861
        %v1865 = vlaneseq
        %v1866 = vshrl.u32 %v1865, 7
        %v1867 = vsub.s32 0, %v1866
        %v1868 = vrot.slane %v1843, %v1867
        %v1870 = vadd.f32 %v1863, %v1868
        %v1871 = vpack.c.bf16 %v1870, %v1870
        %v1872 = vld [vmem:[#allocation2] sm:$0xf]
        %v1873 = vld [vmem:[#allocation2 + $0x4] sm:$0xf]
        %v1874 = vld [vmem:[#allocation2 + $0x8] sm:$0xf]
        %v1875 = vld [vmem:[#allocation2 + $0xc] sm:$0xf]
        %v1876 = vld [vmem:[#allocation5] sm:$0x1]
        %v1878 = vlaneseq
        %v1879 = vshrl.u32 %v1878, 7
        %v1880 = vsub.s32 0, %v1879
        %v1881 = vrot.slane %v1876, %v1880
        %v1887 = vunpack.c.l.b16 %v1872
        %v1888 = vunpack.c.l.b16 %v1873
        %v1889 = vunpack.c.l.b16 %v1874
        %v1890 = vunpack.c.l.b16 %v1875
        %v1891 = vpack.c.b16 %v1888, %v1887
        %v1892 = vpack.c.b16 %v1890, %v1889
        %v1896 = vsel %vm495, %v1871, 0
        %1898 = vmatprep.subr.bf16.mxu0 0
        %1899 = vmatpush1.bf16.msra.mxu0 0
        %1900 = vmatprep.subr.bf16.mxu0 0
        %1901 = vmatpush1.bf16.msra.mxu0 0
        %1902 = vmatprep.subr.bf16.mxu0 0
        %1903 = vmatpush1.bf16.msra.mxu0 0
        %1904 = vmatprep.subr.bf16.mxu0 0
        %1905 = vmatpush1.bf16.msra.mxu0 0
        %1906 = vmatprep.subr.bf16.mxu0 0
        %1907 = vmatpush1.bf16.msra.mxu0 0
        %1908 = vmatprep.subr.bf16.mxu0 0
        %1909 = vmatpush1.bf16.msra.mxu0 0
        %1910 = vmatprep.subr.bf16.mxu0 0
        %1911 = vmatpush1.bf16.msra.mxu0 %v1892
        %1912 = vmatprep.subr.bf16.mxu0 0
        %1913 = vmatpush1.bf16.msra.mxu0 %v1891
        %1914 = vmatprep.subr.bf16.mxu0 0
        %1915 = vmatpush2.bf16.msra.mxu0 0
        %1916 = vmatprep.subr.bf16.mxu0 0
        %1917 = vmatpush2.bf16.msra.mxu0 0
        %1918 = vmatprep.subr.bf16.mxu0 0
        %1919 = vmatpush2.bf16.msra.mxu0 0
        %1920 = vmatprep.subr.bf16.mxu0 0
        %1921 = vmatpush2.bf16.msra.mxu0 0
        %1922 = vmatprep.subr.bf16.mxu0 0
        %1923 = vmatpush2.bf16.msra.mxu0 0
        %1924 = vmatprep.subr.bf16.mxu0 0
        %1925 = vmatpush2.bf16.msra.mxu0 0
        %1926 = vmatprep.subr.bf16.mxu0 0
        %1927 = vmatpush2.bf16.msra.mxu0 0
        %1928 = vmatprep.subr.bf16.mxu0 0
        %1929 = vmatpush2.bf16.msra.mxu0 0
        %1930 = vmatprep.mubr.bf16.mxu0 0
        %1931 = vmatmul.mubr.bf16.gmra.mxu0 %v1896
        %v1932 = vpop.f32.mrf.mxu0
        %v1933 = vadd.f32 %v1881, %v1932
        %v1934 = vpop.f32.mrf.mxu0
        %v1935 = vpop.f32.mrf.mxu0
        %v1936 = vpop.f32.mrf.mxu0
        %1937 = vdwg.mxu0
        %v1938 = vmul.f32 %v1933, 0.5
        %v1939 = vrcp.pop 1.4142135
        %v1940 = vmul.f32 %v1933, %v1939
        %v1941 = verf.f32.pop %v1940
        %v1942 = vadd.f32 %v1941, 1.0
        %v1943 = vmul.f32 %v1938, %v1942
        %v1944 = vpack.c.bf16 %v1943, %v1943
        %v1945 = vld [vmem:[%s12] sm:$0xf]
        %v1946 = vld [vmem:[%s12 + $0x4] sm:$0xf]
        %v1947 = vld [vmem:[%s12 + $0x8] sm:$0xf]
        %v1948 = vld [vmem:[%s12 + $0xc] sm:$0xf]
        %v1949 = vld [vmem:[%s12 + $0x10] sm:$0xf]
        %v1950 = vld [vmem:[%s12 + $0x14] sm:$0xf]
        %v1951 = vld [vmem:[%s12 + $0x18] sm:$0xf]
        %v1952 = vld [vmem:[%s12 + $0x1c] sm:$0xf]
        %v1953 = vld [vmem:[%s12 + $0x20] sm:$0xf]
        %v1954 = vld [vmem:[%s12 + $0x24] sm:$0xf]
        %v1955 = vld [vmem:[%s12 + $0x28] sm:$0xf]
        %v1956 = vld [vmem:[%s12 + $0x2c] sm:$0xf]
        %v1957 = vld [vmem:[%s12 + $0x30] sm:$0xf]
        %v1958 = vld [vmem:[%s12 + $0x34] sm:$0xf]
        %v1959 = vld [vmem:[%s12 + $0x38] sm:$0xf]
        %v1960 = vld [vmem:[%s12 + $0x3c] sm:$0xf]
        %v1961 = vld [vmem:[%s13] sm:$0x1]
        %v1963 = vlaneseq
        %v1964 = vshrl.u32 %v1963, 7
        %v1965 = vsub.s32 0, %v1964
        %v1966 = vrot.slane %v1961, %v1965
        %v1984 = vunpack.c.l.b16 %v1945
        %v1985 = vunpack.c.l.b16 %v1946
        %v1986 = vunpack.c.l.b16 %v1947
        %v1987 = vunpack.c.l.b16 %v1948
        %v1988 = vunpack.c.l.b16 %v1949
        %v1989 = vunpack.c.l.b16 %v1950
        %v1990 = vunpack.c.l.b16 %v1951
        %v1991 = vunpack.c.l.b16 %v1952
        %v1992 = vunpack.c.l.b16 %v1953
        %v1993 = vunpack.c.l.b16 %v1954
        %v1994 = vunpack.c.l.b16 %v1955
        %v1995 = vunpack.c.l.b16 %v1956
        %v1996 = vunpack.c.l.b16 %v1957
        %v1997 = vunpack.c.l.b16 %v1958
        %v1998 = vunpack.c.l.b16 %v1959
        %v1999 = vunpack.c.l.b16 %v1960
        %v2000 = vpack.c.b16 %v1985, %v1984
        %v2001 = vpack.c.b16 %v1987, %v1986
        %v2002 = vpack.c.b16 %v1989, %v1988
        %v2003 = vpack.c.b16 %v1991, %v1990
        %v2004 = vpack.c.b16 %v1993, %v1992
        %v2005 = vpack.c.b16 %v1995, %v1994
        %v2006 = vpack.c.b16 %v1997, %v1996
        %v2007 = vpack.c.b16 %v1999, %v1998
        %2016 = vmatprep.subr.bf16.mxu0 0
        %2017 = vmatpush1.bf16.msra.mxu0 %v2007
        %2018 = vmatprep.subr.bf16.mxu0 0
        %2019 = vmatpush1.bf16.msra.mxu0 %v2006
        %2020 = vmatprep.subr.bf16.mxu0 0
        %2021 = vmatpush1.bf16.msra.mxu0 %v2005
        %2022 = vmatprep.subr.bf16.mxu0 0
        %2023 = vmatpush1.bf16.msra.mxu0 %v2004
        %2024 = vmatprep.subr.bf16.mxu0 0
        %2025 = vmatpush1.bf16.msra.mxu0 %v2003
        %2026 = vmatprep.subr.bf16.mxu0 0
        %2027 = vmatpush1.bf16.msra.mxu0 %v2002
        %2028 = vmatprep.subr.bf16.mxu0 0
        %2029 = vmatpush1.bf16.msra.mxu0 %v2001
        %2030 = vmatprep.subr.bf16.mxu0 0
        %2031 = vmatpush1.bf16.msra.mxu0 %v2000
        %2032 = vmatprep.subr.bf16.mxu0 0
        %2033 = vmatpush2.bf16.msra.mxu0 0
        %2034 = vmatprep.subr.bf16.mxu0 0
        %2035 = vmatpush2.bf16.msra.mxu0 0
        %2036 = vmatprep.subr.bf16.mxu0 0
        %2037 = vmatpush2.bf16.msra.mxu0 0
        %2038 = vmatprep.subr.bf16.mxu0 0
        %2039 = vmatpush2.bf16.msra.mxu0 0
        %2040 = vmatprep.subr.bf16.mxu0 0
        %2041 = vmatpush2.bf16.msra.mxu0 0
        %2042 = vmatprep.subr.bf16.mxu0 0
        %2043 = vmatpush2.bf16.msra.mxu0 0
        %2044 = vmatprep.subr.bf16.mxu0 0
        %2045 = vmatpush2.bf16.msra.mxu0 0
        %2046 = vmatprep.subr.bf16.mxu0 0
        %2047 = vmatpush2.bf16.msra.mxu0 0
        %2048 = vmatprep.mubr.bf16.mxu0 0
        %2049 = vmatmul.mubr.bf16.gmra.mxu0 %v1944
        %v2050 = vpop.f32.mrf.mxu0
        %v2051 = vadd.f32 %v1966, %v2050
        %v2052 = vpop.f32.mrf.mxu0
        %v2053 = vpop.f32.mrf.mxu0
        %v2054 = vpop.f32.mrf.mxu0
        %2055 = vdwg.mxu0
        %v2056 = vadd.f32 %v1841, %v2051
        %2057 = vst.msk [vmem:[%s486] sm:$0xff] %vm495, %v2056
        %s2058 = sand.u32 %s337, 1
        %s2059 = scalar_lea.sflag [#allocation4], %s2058
        %s2060 = sand.u32 %s337, 1
        %s2061 = smul.addr %s2060, 8
        %s2062 = scalar_lea.vmem [#allocation7], %s2061
        // Predicated region
        $region85: #{tpu_custom_call.1} parent=75 // pred_check
          %p2063 = pneg %p347
        $region86: #{tpu_custom_call.1} parent=75 // pred_check_branch
          %2065 = sbr.rel (%p2063) target = $region88
        $region87: #{tpu_custom_call.1} parent=75 // pred_region
          %s2067 = ssub.s32 128, 128
          %2068 = vsyncadd %s2059, %s2067
          %s2069 = smul.addr %s30, 128
          %s2070 = scalar_lea.hbm %s14, %s2069
          %s2072 = sshll.u32 %s2062, 4
          %s2073 = int_to_ptr.vmem [resolvable:$true] %s2072
          %2075 = dma.vmem_to_hbm [thread:$0]  %s2073, 128, %s2070, %s2059
        $region88: #{tpu_custom_call.1} parent=75 // pred_fallthru
          _
      $region76: #{tpu_custom_call.1} parent=5 // pred_fallthru
        _
      %p2076 = scmp.le.s32.totalorder 2, %s25
      // Predicated region
      $region89: #{tpu_custom_call.1} parent=5 // pred_check
        %p2077 = pneg %p2076
      $region90: #{tpu_custom_call.1} parent=5 // pred_check_branch
        %2079 = sbr.rel (%p2077) target = $region92
      $region91: #{tpu_custom_call.1} parent=5 // pred_region
        %s2080 = ssub.s32 %s25, 2
        // Predicated region
        $region93: #{tpu_custom_call.1} parent=91 // pred_check
          %p2081 = pneg %p353
        $region94: #{tpu_custom_call.1} parent=91 // pred_check_branch
          %2083 = sbr.rel (%p2081) target = $region96
        $region95: #{tpu_custom_call.1} parent=91 // pred_region
          %s2084 = sand.u32 %s338, 1
          %s2085 = scalar_lea.sflag [#allocation4], %s2084
          %s2086 = sand.u32 %s338, 1
          %s2087 = smul.addr %s2086, 8
          %s2088 = scalar_lea.vmem [#allocation7], %s2087
          %2089 = dma.done %s2085, 128
        $region96: #{tpu_custom_call.1} parent=91 // pred_fallthru
          _
      $region92: #{tpu_custom_call.1} parent=5 // pred_fallthru
        _
    $region6: #{tpu_custom_call.1} parent=1 // loop_footer
      %s29 = sadd.s32 1, %s25
    $region7: #{tpu_custom_call.1} parent=1 // loop_footer_branch
      %24 = sbr.rel target = $region3
    $region8: #{tpu_custom_call.1} parent=1 // loop_exit
      _
    %2090 = vsyncpa [#allocation3], 1
    %s2091 = scalar_lea.sflag [#allocation3], 1
    %2092 = vsyncpa %s2091, 1
    %2093 = vsyncpa [#allocation6], 1
    %2094 = vsyncpa [#allocation4], 1
    %s2095 = scalar_lea.sflag [#allocation4], 1
    %2096 = vsyncpa %s2095, 1

</llo_original>
